<compile_context>
chip_gen: v7x
topology: tpu7x:2x2x1
jax: 0.10.0
libtpu: 0.0.40
codegen_flags: <defaults>
</compile_context>

<pallas_src>
import functools

import jax
import jax.numpy as jnp
from jax import lax
from jax.experimental import pallas as pl
from jax.experimental.pallas import tpu as pltpu

LN_EPS = 1e-5


def _choose_tq(n_tok, seq_len, max_tq, need_seq_align):
    """Largest multiple-of-8 token tile <= max_tq dividing n_tok (and compatible
    with the default position ramp when needed: TQ | S or S | TQ)."""
    best = None
    d = 8
    while d <= min(max_tq, n_tok):
        ok = n_tok % d == 0
        if ok and need_seq_align:
            ok = (seq_len % d == 0) or (d % seq_len == 0)
        if ok:
            best = d
        d += 8
    return best


def _choose_tc(tq, max_tc):
    """Largest multiple-of-8 chunk size <= max_tc dividing tq."""
    best = 8
    d = 8
    while d <= min(max_tc, tq):
        if tq % d == 0:
            best = d
        d += 8
    return best


def _layernorm(x, gamma, beta, eps):
    mean = jnp.mean(x, axis=-1, keepdims=True)
    xc = x - mean
    var = jnp.mean(xc * xc, axis=-1, keepdims=True)   # biased variance (LayerNorm)
    y = xc * lax.rsqrt(var + eps)                     # rsqrt -> EUP slot (cheap)
    return y * gamma + beta


# ----------------------------------------------------------------------------
# Fast path: word table resident in VMEM, gather via one-hot matmul on the MXU.
# ----------------------------------------------------------------------------
def _embed_ln_vmem_kernel(ids_ref,                   # (TQ, 1) int32 (VMEM)
                          word_ref,                  # (V, H) word table (VMEM, resident)
                          pos_ref,                   # (TQ, H) position tile (VMEM)
                          gamma_ref, beta_ref,       # (1, H) LayerNorm params (VMEM)
                          out_ref,                   # (TQ, H) output tile (VMEM)
                          *, eps):
    ids = ids_ref[...]                               # (TQ, 1)
    tq = ids.shape[0]
    vocab = word_ref.shape[0]
    iota = lax.broadcasted_iota(jnp.int32, (tq, vocab), 1)
    onehot = jnp.where(ids == iota, 1.0, 0.0).astype(word_ref.dtype)   # exact 0/1
    # Exact row extraction on the (otherwise idle) MXU.
    w = jnp.dot(onehot, word_ref[...],
                preferred_element_type=jnp.float32,
                precision=lax.Precision.HIGHEST)                       # (TQ, H)
    x = w + pos_ref[...].astype(jnp.float32)
    gamma = gamma_ref[...].astype(jnp.float32)       # (1, H) broadcasts over rows
    beta = beta_ref[...].astype(jnp.float32)
    out_ref[...] = _layernorm(x, gamma, beta, eps).astype(out_ref.dtype)


# ----------------------------------------------------------------------------
# Large-vocab path: word table stays in HBM, per-row DMA gather, double-buffered
# per TC-row chunk inside each grid step.
# ----------------------------------------------------------------------------
def _embed_ln_hbm_kernel(ids_ref,                    # scalar prefetch (SMEM): [n_tok] int32
                         word_hbm,                   # word table, raw HBM ref (pl.ANY)
                         pos_ref,                    # (TQ, H) position tile (VMEM)
                         gamma_ref, beta_ref,        # (1, H) LayerNorm params (VMEM)
                         out_ref,                    # (TQ, H) output tile (VMEM)
                         wbuf, sems,                 # scratch: (2, TC, H) VMEM, (2, TC) DMA sems
                         *, tq, tc, eps):
    t = pl.program_id(0)
    nc = tq // tc                                    # chunks per token tile (static)

    gamma = gamma_ref[...].astype(jnp.float32)
    beta = beta_ref[...].astype(jnp.float32)

    def issue(chunk, slot):
        base = t * tq + chunk * tc

        def row_body(r, carry):
            row = ids_ref[base + r]                  # dynamic SMEM scalar read
            pltpu.make_async_copy(word_hbm.at[pl.ds(row, 1)],
                                  wbuf.at[slot, pl.ds(r, 1)],
                                  sems.at[slot, r]).start()
            return carry

        lax.fori_loop(0, tc, row_body, 0)

    # Prime: gather the first chunk's word rows.
    issue(0, 0)

    def chunk_body(c, carry):
        slot = c & 1

        # Prefetch the next chunk's rows into the other slot; overlaps with the
        # wait + LayerNorm compute of the current chunk.
        @pl.when(c + 1 < nc)
        def _():
            issue(c + 1, 1 - slot)

        # Wait for the current chunk's row DMAs.
        def wait_body(r, carry2):
            pltpu.make_async_copy(word_hbm.at[pl.ds(0, 1)],
                                  wbuf.at[slot, pl.ds(r, 1)],
                                  sems.at[slot, r]).wait()
            return carry2

        lax.fori_loop(0, tc, wait_body, 0)

        start = pl.multiple_of(c * tc, 8)
        w = wbuf[slot].astype(jnp.float32)                      # (TC, H)
        p = pos_ref[pl.ds(start, tc), :].astype(jnp.float32)    # (TC, H)
        out_ref[pl.ds(start, tc), :] = _layernorm(w + p, gamma, beta, eps).astype(out_ref.dtype)
        return carry

    lax.fori_loop(0, nc, chunk_body, 0)


@functools.partial(jax.jit,
                   static_argnames=("max_tq", "max_tc", "force_hbm_gather",
                                    "vmem_table_budget"))
def bert_embeddings_forward(input_ids, word_emb, pos_emb, ln_gamma, ln_beta,
                            token_type_ids=None, position_ids=None,
                            *, max_tq=512, max_tc=128, force_hbm_gather=False,
                            vmem_table_budget=4 * 1024 * 1024):
    """Pallas implementation of BertEmbeddings.forward (eval mode).

    input_ids: [B, S] int32
    word_emb : [vocab, H]      pos_emb: [max_pos, H]
    ln_gamma, ln_beta: [H]
    returns  : [B, S, H] float32
    """
    del token_type_ids  # computed-but-unused in the reference module forward
    B, S = input_ids.shape
    V, H = word_emb.shape
    n_tok = B * S

    tq = _choose_tq(n_tok, S, max_tq, need_seq_align=position_ids is None)
    if tq is None:
        # TODO(synk): pad the token count to a multiple of 8 for odd B*S / S shapes.
        raise NotImplementedError(
            "B*S (and S for default positions) must admit a multiple-of-8 token tile")
    n_tiles = n_tok // tq

    flat_ids = input_ids.reshape(-1).astype(jnp.int32)

    # Position-embedding slab + block index map (default ramp needs no gather).
    if position_ids is None:
        if tq <= S:
            pos_slab = pos_emb[:S]
            n_pos_blocks = S // tq
            pos_block = lambda t: (t % n_pos_blocks, 0)
        else:
            pos_slab = jnp.tile(pos_emb[:S], (tq // S, 1))
            pos_block = lambda t: (0, 0)
    else:
        # TODO(synk): custom position_ids use a single XLA gather outside the kernel.
        pos_slab = jnp.take(pos_emb, position_ids.reshape(-1).astype(jnp.int32), axis=0)
        pos_block = lambda t: (t, 0)

    gamma2d = ln_gamma.reshape(1, H)
    beta2d = ln_beta.reshape(1, H)

    table_bytes = V * H * word_emb.dtype.itemsize
    onehot_bytes = tq * V * 4
    use_vmem_table = (not force_hbm_gather
                      and table_bytes <= vmem_table_budget
                      and onehot_bytes <= vmem_table_budget)

    if use_vmem_table:
        # --- Fast path: table resident in VMEM, MXU one-hot gather. ---
        ids2d = flat_ids.reshape(n_tok, 1)
        grid_spec = pltpu.PrefetchScalarGridSpec(
            num_scalar_prefetch=0,
            grid=(n_tiles,),
            in_specs=[
                pl.BlockSpec((tq, 1), lambda t: (t, 0)),      # token ids
                pl.BlockSpec((V, H), lambda t: (0, 0)),       # word table (fetched once)
                pl.BlockSpec((tq, H), pos_block),             # contiguous position tile
                pl.BlockSpec((1, H), lambda t: (0, 0)),       # gamma
                pl.BlockSpec((1, H), lambda t: (0, 0)),       # beta
            ],
            out_specs=pl.BlockSpec((tq, H), lambda t: (t, 0)),
        )
        out_flat = pl.pallas_call(
            functools.partial(_embed_ln_vmem_kernel, eps=LN_EPS),
            out_shape=jax.ShapeDtypeStruct((n_tok, H), jnp.float32),
            grid_spec=grid_spec,
            compiler_params=pltpu.CompilerParams(
                dimension_semantics=("parallel",),            # independent tiles
                vmem_limit_bytes=32 * 1024 * 1024),
        )(ids2d, word_emb, pos_slab, gamma2d, beta2d)
    else:
        # --- Large-vocab path: per-row DMA gather from HBM, double-buffered. ---
        tc = _choose_tc(tq, max_tc)
        kernel = functools.partial(_embed_ln_hbm_kernel, tq=tq, tc=tc, eps=LN_EPS)
        grid_spec = pltpu.PrefetchScalarGridSpec(
            num_scalar_prefetch=1,
            grid=(n_tiles,),
            in_specs=[
                pl.BlockSpec(memory_space=pl.ANY),                # word table stays in HBM
                pl.BlockSpec((tq, H), lambda t, ids: pos_block(t)),
                pl.BlockSpec((1, H), lambda t, ids: (0, 0)),      # gamma
                pl.BlockSpec((1, H), lambda t, ids: (0, 0)),      # beta
            ],
            out_specs=pl.BlockSpec((tq, H), lambda t, ids: (t, 0)),
            scratch_shapes=[
                pltpu.VMEM((2, tc, H), word_emb.dtype),           # double-buffered rows
                pltpu.SemaphoreType.DMA((2, tc)),
            ],
        )
        out_flat = pl.pallas_call(
            kernel,
            out_shape=jax.ShapeDtypeStruct((n_tok, H), jnp.float32),
            grid_spec=grid_spec,
            compiler_params=pltpu.CompilerParams(
                dimension_semantics=("parallel",),
                vmem_limit_bytes=32 * 1024 * 1024),
        )(flat_ids, word_emb, pos_slab, gamma2d, beta2d)

    return out_flat.reshape(B, S, H)


def _reference(input_ids, word_emb, pos_emb, ln_gamma, ln_beta, position_ids=None):
    B, S = input_ids.shape
    if position_ids is None:
        position_ids = jnp.broadcast_to(jnp.arange(S), (B, S))
    x = word_emb[input_ids] + pos_emb[position_ids]
    mean = x.mean(-1, keepdims=True)
    var = ((x - mean) ** 2).mean(-1, keepdims=True)
    y = (x - mean) / jnp.sqrt(var + LN_EPS)
    return y * ln_gamma + ln_beta


if __name__ == "__main__":
    # Small, module-consistent shapes.
    B, S, H = 2, 64, 128
    VOCAB, MAX_POS = 256, 64

    key = jax.random.PRNGKey(0)
    k_ids, k_w, k_p, k_g, k_b = jax.random.split(key, 5)

    input_ids = jax.random.randint(k_ids, (B, S), 0, VOCAB, dtype=jnp.int32)
    word_emb = jax.random.normal(k_w, (VOCAB, H), dtype=jnp.float32) * 0.02
    pos_emb = jax.random.normal(k_p, (MAX_POS, H), dtype=jnp.float32) * 0.02
    ln_gamma = 1.0 + 0.1 * jax.random.normal(k_g, (H,), dtype=jnp.float32)
    ln_beta = 0.1 * jax.random.normal(k_b, (H,), dtype=jnp.float32)

    ref = _reference(input_ids, word_emb, pos_emb, ln_gamma, ln_beta)

    # 1) Fast path: word table resident in VMEM, MXU one-hot gather (TQ=128).
    out = bert_embeddings_forward(input_ids, word_emb, pos_emb, ln_gamma, ln_beta)
    out = jax.block_until_ready(out)
    assert out.shape == (B, S, H), out.shape
    assert jnp.allclose(out, ref, atol=2e-4, rtol=2e-4), "mismatch (VMEM-table path)"

    # 2) Large-vocab path forced: HBM per-row DMA gather, default tiling (TQ=TC=128).
    out2 = bert_embeddings_forward(input_ids, word_emb, pos_emb, ln_gamma, ln_beta,
                                   force_hbm_gather=True)
    out2 = jax.block_until_ready(out2)
    assert jnp.allclose(out2, ref, atol=2e-4, rtol=2e-4), "mismatch (HBM gather)"

    # 3) Large-vocab path with several grid steps + in-step double buffering (TQ=32, TC=8).
    out3 = bert_embeddings_forward(input_ids, word_emb, pos_emb, ln_gamma, ln_beta,
                                   force_hbm_gather=True, max_tq=32, max_tc=8)
    out3 = jax.block_until_ready(out3)
    assert jnp.allclose(out3, ref, atol=2e-4, rtol=2e-4), "mismatch (HBM gather, small tiles)"

    # 4) Explicit (non-default) position_ids path.
    pos_ids = jnp.flip(jnp.broadcast_to(jnp.arange(S, dtype=jnp.int32), (B, S)), axis=1)
    out4 = bert_embeddings_forward(input_ids, word_emb, pos_emb, ln_gamma, ln_beta,
                                   position_ids=pos_ids)
    out4 = jax.block_until_ready(out4)
    ref4 = _reference(input_ids, word_emb, pos_emb, ln_gamma, ln_beta, position_ids=pos_ids)
    assert jnp.allclose(out4, ref4, atol=2e-4, rtol=2e-4), "mismatch (custom position_ids)"

    print("KERNEL_OK")
</pallas_src>

<mosaic_0001>
module attributes {stable_mosaic.version = 11 : i64} {
  func.func @_embed_ln_vmem_kernel(%arg0: i32, %arg1: memref<128x1xi32, #tpu.memory_space<vmem>>, %arg2: memref<256x128xf32, #tpu.memory_space<vmem>>, %arg3: memref<128x128xf32, #tpu.memory_space<vmem>>, %arg4: memref<1x128xf32, #tpu.memory_space<vmem>>, %arg5: memref<1x128xf32, #tpu.memory_space<vmem>>, %arg6: memref<128x128xf32, #tpu.memory_space<vmem>>) attributes {dimension_semantics = [#tpu.dimension_semantics<parallel>], iteration_bounds = array<i64: 1>, scalar_prefetch = 0 : i64, scratch_operands = 0 : i64, tpu.core_type = #tpu.core_type<tc>, window_params = [{transform_indices = @transform_0, window_bounds = array<i64: 128, 1>}, {pipeline_mode = #tpu.pipeline_mode<synchronous>, transform_indices = @transform_1, window_bounds = array<i64: 256, 128>}, {pipeline_mode = #tpu.pipeline_mode<synchronous>, transform_indices = @transform_2, window_bounds = array<i64: 128, 128>}, {pipeline_mode = #tpu.pipeline_mode<synchronous>, transform_indices = @transform_3, window_bounds = array<i64: 1, 128>}, {pipeline_mode = #tpu.pipeline_mode<synchronous>, transform_indices = @transform_4, window_bounds = array<i64: 1, 128>}, {transform_indices = @transform_5, window_bounds = array<i64: 128, 128>}]} {
    %c0 = arith.constant 0 : index
    %c0_0 = arith.constant 0 : index
    %0 = vector.load %arg1[%c0, %c0_0] : memref<128x1xi32, #tpu.memory_space<vmem>>, vector<128x1xi32>
    %1 = tpu.iota {dimensions = array<i32: 1>} : vector<128x256xi32>
    %2 = vector.broadcast %0 : vector<128x1xi32> to vector<128x256xi32>
    %3 = arith.cmpi eq, %2, %1 : vector<128x256xi32>
    %cst = arith.constant 1.000000e+00 : f32
    %cst_1 = arith.constant 0.000000e+00 : f32
    %4 = vector.broadcast %cst : f32 to vector<128x256xf32>
    %5 = vector.broadcast %cst_1 : f32 to vector<128x256xf32>
    %6 = arith.select %3, %4, %5 : vector<128x256xi1>, vector<128x256xf32>
    %c0_2 = arith.constant 0 : index
    %c0_3 = arith.constant 0 : index
    %7 = vector.load %arg2[%c0_2, %c0_3] : memref<256x128xf32, #tpu.memory_space<vmem>>, vector<256x128xf32>
    %cst_4 = arith.constant dense<0.000000e+00> : vector<128x128xf32>
    %8 = tpu.matmul %6, %7, %cst_4 {dimension_numbers = #tpu.dot_dimension_numbers<[1], [0], [0], [1], [0, 0, 1, 1], [], []>, precision = #tpu.contract_precision<fp32>} : vector<128x256xf32>, vector<256x128xf32>, vector<128x128xf32> -> vector<128x128xf32>
    %c0_5 = arith.constant 0 : index
    %c0_6 = arith.constant 0 : index
    %9 = vector.load %arg3[%c0_5, %c0_6] : memref<128x128xf32, #tpu.memory_space<vmem>>, vector<128x128xf32>
    %10 = arith.addf %8, %9 : vector<128x128xf32>
    %c0_7 = arith.constant 0 : index
    %c0_8 = arith.constant 0 : index
    %11 = vector.load %arg4[%c0_7, %c0_8] : memref<1x128xf32, #tpu.memory_space<vmem>>, vector<1x128xf32>
    %c0_9 = arith.constant 0 : index
    %c0_10 = arith.constant 0 : index
    %12 = vector.load %arg5[%c0_9, %c0_10] : memref<1x128xf32, #tpu.memory_space<vmem>>, vector<1x128xf32>
    %cst_11 = arith.constant dense<0.000000e+00> : vector<128xf32>
    %13 = vector.multi_reduction <add>, %10, %cst_11 [1] : vector<128x128xf32> to vector<128xf32>
    %14 = vector.shape_cast %13 : vector<128xf32> to vector<128x1xf32>
    %cst_12 = arith.constant 1.280000e+02 : f32
    %15 = vector.broadcast %cst_12 : f32 to vector<128x1xf32>
    %16 = arith.divf %14, %15 : vector<128x1xf32>
    %17 = vector.broadcast %16 : vector<128x1xf32> to vector<128x128xf32>
    %18 = arith.subf %10, %17 : vector<128x128xf32>
    %19 = arith.mulf %18, %18 : vector<128x128xf32>
    %cst_13 = arith.constant dense<0.000000e+00> : vector<128xf32>
    %20 = vector.multi_reduction <add>, %19, %cst_13 [1] : vector<128x128xf32> to vector<128xf32>
    %21 = vector.shape_cast %20 : vector<128xf32> to vector<128x1xf32>
    %cst_14 = arith.constant 1.280000e+02 : f32
    %22 = vector.broadcast %cst_14 : f32 to vector<128x1xf32>
    %23 = arith.divf %21, %22 : vector<128x1xf32>
    %cst_15 = arith.constant 9.99999974E-6 : f32
    %24 = vector.broadcast %cst_15 : f32 to vector<128x1xf32>
    %25 = arith.addf %23, %24 : vector<128x1xf32>
    %26 = math.rsqrt %25 : vector<128x1xf32>
    %27 = vector.broadcast %26 : vector<128x1xf32> to vector<128x128xf32>
    %28 = arith.mulf %18, %27 : vector<128x128xf32>
    %29 = vector.broadcast %11 : vector<1x128xf32> to vector<128x128xf32>
    %30 = arith.mulf %28, %29 : vector<128x128xf32>
    %31 = vector.broadcast %12 : vector<1x128xf32> to vector<128x128xf32>
    %32 = arith.addf %30, %31 : vector<128x128xf32>
    %c0_16 = arith.constant 0 : index
    %c0_17 = arith.constant 0 : index
    %33 = vector.load %arg6[%c0_16, %c0_17] : memref<128x128xf32, #tpu.memory_space<vmem>>, vector<128x128xf32>
    tpu.vector_store %arg6[%c0_16, %c0_17], %32 {strides = array<i32>} : memref<128x128xf32, #tpu.memory_space<vmem>>, vector<128x128xf32>,
    return
  }
  func.func @transform_0(%arg0: i32) -> (i32, i32) {
    %c0_i32 = arith.constant 0 : i32
    %c0_i32_0 = arith.constant 0 : i32
    return %arg0, %c0_i32 : i32, i32
  }
  func.func @transform_1(%arg0: i32) -> (i32, i32) {
    %c0_i32 = arith.constant 0 : i32
    %c0_i32_0 = arith.constant 0 : i32
    %c0_i32_1 = arith.constant 0 : i32
    return %c0_i32, %c0_i32_0 : i32, i32
  }
  func.func @transform_2(%arg0: i32) -> (i32, i32) {
    %c0_i32 = arith.constant 0 : i32
    %c0_i32_0 = arith.constant 0 : i32
    %c0_i32_1 = arith.constant 0 : i32
    return %c0_i32, %c0_i32_0 : i32, i32
  }
  func.func @transform_3(%arg0: i32) -> (i32, i32) {
    %c0_i32 = arith.constant 0 : i32
    %c0_i32_0 = arith.constant 0 : i32
    %c0_i32_1 = arith.constant 0 : i32
    return %c0_i32, %c0_i32_0 : i32, i32
  }
  func.func @transform_4(%arg0: i32) -> (i32, i32) {
    %c0_i32 = arith.constant 0 : i32
    %c0_i32_0 = arith.constant 0 : i32
    %c0_i32_1 = arith.constant 0 : i32
    return %c0_i32, %c0_i32_0 : i32, i32
  }
  func.func @transform_5(%arg0: i32) -> (i32, i32) {
    %c0_i32 = arith.constant 0 : i32
    %c0_i32_0 = arith.constant 0 : i32
    return %arg0, %c0_i32 : i32, i32
  }
}

</mosaic_0001>

<llo_original>
// kernel: bert_embeddings_forward.1
$region0: #{bert_embeddings_forward.1}
  #allocation0 [shape = 'u32[]', space=smem, size = 0x4, offset = 0x4, fixed_abs, tag = 'smem constant byte address 0x4 - core index']
  #allocation1 [shape = 'u32[144,128]{1,0:T(1,128)}', space=vmem, size = 0x12000, scoped, tag = 'internal scratch']
  %s0 = inlined_call_operand.vmem [shape: s32[128,1], index: 0, kind: input, shape index: {}]
  %s1 = inlined_call_operand.vmem [shape: f32[256,128], index: 1, kind: input, shape index: {}]
  %s2 = inlined_call_operand.vmem [shape: f32[128,128], index: 2, kind: input, shape index: {}]
  %s3 = inlined_call_operand.vmem [shape: f32[1,128], index: 3, kind: input, shape index: {}]
  %s4 = inlined_call_operand.vmem [shape: f32[1,128], index: 4, kind: input, shape index: {}]
  %s5 = inlined_call_operand.hbm [shape: f32[128,128], index: 5, kind: output, shape index: {}]
  %s6 = sld [smem:[#allocation0]]
  $region30: #{bert_embeddings_forward.1} parent=0
    _
  %s8 = ssub.s32 1, %s6
  %s9 = scalar_select 0, %s8, %s6
  $region1: #{bert_embeddings_forward.1} parent=0
    #allocation2 [shape = 'u8[65536]{0}', space=vmem, size = 0x10000, scoped, tag = 'output window, operand 0, single buffered']
    #allocation3 [shape = 's32[1]{0}', space=sflag, size = 0x4, scoped, tag = 'scoped memory for bert_embeddings_forward.1']
    %10 = vsyncpa [#allocation3], 0
    // Predicated region
    $region2: #{bert_embeddings_forward.1} parent=1 // pred_check
      _
    $region3: #{bert_embeddings_forward.1} parent=1 // pred_check_branch
      %12 = sbr.rel (0) target = $region5
    $region4: #{bert_embeddings_forward.1} parent=1 // pred_region
      _
    $region5: #{bert_embeddings_forward.1} parent=1 // pred_fallthru
      _
    // Predicated region
    $region6: #{bert_embeddings_forward.1} parent=1 // pred_check
      _
    $region7: #{bert_embeddings_forward.1} parent=1 // pred_check_branch
      %14 = sbr.rel (0) target = $region9
    $region8: #{bert_embeddings_forward.1} parent=1 // pred_region
      _
    $region9: #{bert_embeddings_forward.1} parent=1 // pred_fallthru
      _
    // Predicated region
    $region10: #{bert_embeddings_forward.1} parent=1 // pred_check
      _
    $region11: #{bert_embeddings_forward.1} parent=1 // pred_check_branch
      %16 = sbr.rel (0) target = $region13
    $region12: #{bert_embeddings_forward.1} parent=1 // pred_region
      _
    $region13: #{bert_embeddings_forward.1} parent=1 // pred_fallthru
      _
    // Predicated region
    $region14: #{bert_embeddings_forward.1} parent=1 // pred_check
      _
    $region15: #{bert_embeddings_forward.1} parent=1 // pred_check_branch
      %18 = sbr.rel (0) target = $region17
    $region16: #{bert_embeddings_forward.1} parent=1 // pred_region
      _
    $region17: #{bert_embeddings_forward.1} parent=1 // pred_fallthru
      _
    // Predicated region
    $region18: #{bert_embeddings_forward.1} parent=1 // pred_check
      _
    $region19: #{bert_embeddings_forward.1} parent=1 // pred_check_branch
      %20 = sbr.rel (0) target = $region21
    $region20: #{bert_embeddings_forward.1} parent=1 // pred_region
      _
    $region21: #{bert_embeddings_forward.1} parent=1 // pred_fallthru
      _
    %v21 = vld [vmem:[%s0] sm:$0xff]
    %v22 = vld [vmem:[%s0 + $0x8] sm:$0xff]
    %v23 = vld [vmem:[%s0 + $0x10] sm:$0xff]
    %v24 = vld [vmem:[%s0 + $0x18] sm:$0xff]
    %v25 = vld [vmem:[%s0 + $0x20] sm:$0xff]
    %v26 = vld [vmem:[%s0 + $0x28] sm:$0xff]
    %v27 = vld [vmem:[%s0 + $0x30] sm:$0xff]
    %v28 = vld [vmem:[%s0 + $0x38] sm:$0xff]
    %v29 = vld [vmem:[%s0 + $0x40] sm:$0xff]
    %v30 = vld [vmem:[%s0 + $0x48] sm:$0xff]
    %v31 = vld [vmem:[%s0 + $0x50] sm:$0xff]
    %v32 = vld [vmem:[%s0 + $0x58] sm:$0xff]
    %v33 = vld [vmem:[%s0 + $0x60] sm:$0xff]
    %v34 = vld [vmem:[%s0 + $0x68] sm:$0xff]
    %v35 = vld [vmem:[%s0 + $0x70] sm:$0xff]
    %v36 = vld [vmem:[%s0 + $0x78] sm:$0xff]
    %v37 = vlaneseq
    %v38 = vand.u32 %v37, 127
    %v39 = vadd.s32 %v38, 128
    %40 = vset.pattern.permute.xlu0 0
    %41 = vperm.xlu0 %40, %v21
    %v42 = vpop.permute.xlu0 %41
    %43 = vset.pattern.permute.xlu0 0
    %44 = vperm.xlu0 %43, %v22
    %v45 = vpop.permute.xlu0 %44
    %46 = vset.pattern.permute.xlu0 0
    %47 = vperm.xlu0 %46, %v23
    %v48 = vpop.permute.xlu0 %47
    %49 = vset.pattern.permute.xlu0 0
    %50 = vperm.xlu0 %49, %v24
    %v51 = vpop.permute.xlu0 %50
    %52 = vset.pattern.permute.xlu0 0
    %53 = vperm.xlu0 %52, %v25
    %v54 = vpop.permute.xlu0 %53
    %55 = vset.pattern.permute.xlu0 0
    %56 = vperm.xlu0 %55, %v26
    %v57 = vpop.permute.xlu0 %56
    %58 = vset.pattern.permute.xlu0 0
    %59 = vperm.xlu0 %58, %v27
    %v60 = vpop.permute.xlu0 %59
    %61 = vset.pattern.permute.xlu0 0
    %62 = vperm.xlu0 %61, %v28
    %v63 = vpop.permute.xlu0 %62
    %64 = vset.pattern.permute.xlu0 0
    %65 = vperm.xlu0 %64, %v29
    %v66 = vpop.permute.xlu0 %65
    %67 = vset.pattern.permute.xlu0 0
    %68 = vperm.xlu0 %67, %v30
    %v69 = vpop.permute.xlu0 %68
    %70 = vset.pattern.permute.xlu0 0
    %71 = vperm.xlu0 %70, %v31
    %v72 = vpop.permute.xlu0 %71
    %73 = vset.pattern.permute.xlu0 0
    %74 = vperm.xlu0 %73, %v32
    %v75 = vpop.permute.xlu0 %74
    %76 = vset.pattern.permute.xlu0 0
    %77 = vperm.xlu0 %76, %v33
    %v78 = vpop.permute.xlu0 %77
    %79 = vset.pattern.permute.xlu0 0
    %80 = vperm.xlu0 %79, %v34
    %v81 = vpop.permute.xlu0 %80
    %82 = vset.pattern.permute.xlu0 0
    %83 = vperm.xlu0 %82, %v35
    %v84 = vpop.permute.xlu0 %83
    %85 = vset.pattern.permute.xlu0 0
    %86 = vperm.xlu0 %85, %v36
    %v87 = vpop.permute.xlu0 %86
    %vm88 = vcmp.eq.s32.totalorder %v42, %v38
    %vm89 = vcmp.eq.s32.totalorder %v42, %v39
    %vm90 = vcmp.eq.s32.totalorder %v45, %v38
    %vm91 = vcmp.eq.s32.totalorder %v45, %v39
    %vm92 = vcmp.eq.s32.totalorder %v48, %v38
    %vm93 = vcmp.eq.s32.totalorder %v48, %v39
    %vm94 = vcmp.eq.s32.totalorder %v51, %v38
    %vm95 = vcmp.eq.s32.totalorder %v51, %v39
    %vm96 = vcmp.eq.s32.totalorder %v54, %v38
    %vm97 = vcmp.eq.s32.totalorder %v54, %v39
    %vm98 = vcmp.eq.s32.totalorder %v57, %v38
    %vm99 = vcmp.eq.s32.totalorder %v57, %v39
    %vm100 = vcmp.eq.s32.totalorder %v60, %v38
    %vm101 = vcmp.eq.s32.totalorder %v60, %v39
    %vm102 = vcmp.eq.s32.totalorder %v63, %v38
    %vm103 = vcmp.eq.s32.totalorder %v63, %v39
    %vm104 = vcmp.eq.s32.totalorder %v66, %v38
    %vm105 = vcmp.eq.s32.totalorder %v66, %v39
    %vm106 = vcmp.eq.s32.totalorder %v69, %v38
    %vm107 = vcmp.eq.s32.totalorder %v69, %v39
    %vm108 = vcmp.eq.s32.totalorder %v72, %v38
    %vm109 = vcmp.eq.s32.totalorder %v72, %v39
    %vm110 = vcmp.eq.s32.totalorder %v75, %v38
    %vm111 = vcmp.eq.s32.totalorder %v75, %v39
    %vm112 = vcmp.eq.s32.totalorder %v78, %v38
    %vm113 = vcmp.eq.s32.totalorder %v78, %v39
    %vm114 = vcmp.eq.s32.totalorder %v81, %v38
    %vm115 = vcmp.eq.s32.totalorder %v81, %v39
    %vm116 = vcmp.eq.s32.totalorder %v84, %v38
    %vm117 = vcmp.eq.s32.totalorder %v84, %v39
    %vm118 = vcmp.eq.s32.totalorder %v87, %v38
    %vm119 = vcmp.eq.s32.totalorder %v87, %v39
    %v120 = vsel %vm88, 1.0, 0.0
    %v121 = vsel %vm89, 1.0, 0.0
    %v122 = vsel %vm90, 1.0, 0.0
    %v123 = vsel %vm91, 1.0, 0.0
    %v124 = vsel %vm92, 1.0, 0.0
    %v125 = vsel %vm93, 1.0, 0.0
    %v126 = vsel %vm94, 1.0, 0.0
    %v127 = vsel %vm95, 1.0, 0.0
    %v128 = vsel %vm96, 1.0, 0.0
    %v129 = vsel %vm97, 1.0, 0.0
    %v130 = vsel %vm98, 1.0, 0.0
    %v131 = vsel %vm99, 1.0, 0.0
    %v132 = vsel %vm100, 1.0, 0.0
    %v133 = vsel %vm101, 1.0, 0.0
    %v134 = vsel %vm102, 1.0, 0.0
    %v135 = vsel %vm103, 1.0, 0.0
    %v136 = vsel %vm104, 1.0, 0.0
    %v137 = vsel %vm105, 1.0, 0.0
    %v138 = vsel %vm106, 1.0, 0.0
    %v139 = vsel %vm107, 1.0, 0.0
    %v140 = vsel %vm108, 1.0, 0.0
    %v141 = vsel %vm109, 1.0, 0.0
    %v142 = vsel %vm110, 1.0, 0.0
    %v143 = vsel %vm111, 1.0, 0.0
    %v144 = vsel %vm112, 1.0, 0.0
    %v145 = vsel %vm113, 1.0, 0.0
    %v146 = vsel %vm114, 1.0, 0.0
    %v147 = vsel %vm115, 1.0, 0.0
    %v148 = vsel %vm116, 1.0, 0.0
    %v149 = vsel %vm117, 1.0, 0.0
    %v150 = vsel %vm118, 1.0, 0.0
    %v151 = vsel %vm119, 1.0, 0.0
    %v152 = vld [vmem:[%s1] sm:$0xff]
    %v153 = vld [vmem:[%s1 + $0x8] sm:$0xff]
    %v154 = vld [vmem:[%s1 + $0x10] sm:$0xff]
    %v155 = vld [vmem:[%s1 + $0x18] sm:$0xff]
    %v156 = vld [vmem:[%s1 + $0x20] sm:$0xff]
    %v157 = vld [vmem:[%s1 + $0x28] sm:$0xff]
    %v158 = vld [vmem:[%s1 + $0x30] sm:$0xff]
    %v159 = vld [vmem:[%s1 + $0x38] sm:$0xff]
    %v160 = vld [vmem:[%s1 + $0x40] sm:$0xff]
    %v161 = vld [vmem:[%s1 + $0x48] sm:$0xff]
    %v162 = vld [vmem:[%s1 + $0x50] sm:$0xff]
    %v163 = vld [vmem:[%s1 + $0x58] sm:$0xff]
    %v164 = vld [vmem:[%s1 + $0x60] sm:$0xff]
    %v165 = vld [vmem:[%s1 + $0x68] sm:$0xff]
    %v166 = vld [vmem:[%s1 + $0x70] sm:$0xff]
    %v167 = vld [vmem:[%s1 + $0x78] sm:$0xff]
    %v168 = vld [vmem:[%s1 + $0x80] sm:$0xff]
    %v169 = vld [vmem:[%s1 + $0x88] sm:$0xff]
    %v170 = vld [vmem:[%s1 + $0x90] sm:$0xff]
    %v171 = vld [vmem:[%s1 + $0x98] sm:$0xff]
    %v172 = vld [vmem:[%s1 + $0xa0] sm:$0xff]
    %v173 = vld [vmem:[%s1 + $0xa8] sm:$0xff]
    %v174 = vld [vmem:[%s1 + $0xb0] sm:$0xff]
    %v175 = vld [vmem:[%s1 + $0xb8] sm:$0xff]
    %v176 = vld [vmem:[%s1 + $0xc0] sm:$0xff]
    %v177 = vld [vmem:[%s1 + $0xc8] sm:$0xff]
    %v178 = vld [vmem:[%s1 + $0xd0] sm:$0xff]
    %v179 = vld [vmem:[%s1 + $0xd8] sm:$0xff]
    %v180 = vld [vmem:[%s1 + $0xe0] sm:$0xff]
    %v181 = vld [vmem:[%s1 + $0xe8] sm:$0xff]
    %v182 = vld [vmem:[%s1 + $0xf0] sm:$0xff]
    %v183 = vld [vmem:[%s1 + $0xf8] sm:$0xff]
    %v184 = vld [vmem:[%s2] sm:$0xff]
    %v185 = vld [vmem:[%s2 + $0x8] sm:$0xff]
    %v186 = vld [vmem:[%s2 + $0x10] sm:$0xff]
    %v187 = vld [vmem:[%s2 + $0x18] sm:$0xff]
    %v188 = vld [vmem:[%s2 + $0x20] sm:$0xff]
    %v189 = vld [vmem:[%s2 + $0x28] sm:$0xff]
    %v190 = vld [vmem:[%s2 + $0x30] sm:$0xff]
    %v191 = vld [vmem:[%s2 + $0x38] sm:$0xff]
    %v192 = vld [vmem:[%s2 + $0x40] sm:$0xff]
    %v193 = vld [vmem:[%s2 + $0x48] sm:$0xff]
    %v194 = vld [vmem:[%s2 + $0x50] sm:$0xff]
    %v195 = vld [vmem:[%s2 + $0x58] sm:$0xff]
    %v196 = vld [vmem:[%s2 + $0x60] sm:$0xff]
    %v197 = vld [vmem:[%s2 + $0x68] sm:$0xff]
    %v198 = vld [vmem:[%s2 + $0x70] sm:$0xff]
    %v199 = vld [vmem:[%s2 + $0x78] sm:$0xff]
    %200 = vmatprep.subr.mxu0 0.0
    %v201 = vand.u32 %v152, 4294901760
    %202 = vmatpush1.msra.mxu0 %v201
    %203 = vmatprep.subr.mxu0 0.0
    %v204 = vand.u32 %v153, 4294901760
    %205 = vmatpush1.msra.mxu0 %v204
    %206 = vmatprep.subr.mxu0 0.0
    %v207 = vand.u32 %v154, 4294901760
    %208 = vmatpush1.msra.mxu0 %v207
    %209 = vmatprep.subr.mxu0 0.0
    %v210 = vand.u32 %v155, 4294901760
    %211 = vmatpush1.msra.mxu0 %v210
    %212 = vmatprep.subr.mxu0 0.0
    %v213 = vand.u32 %v156, 4294901760
    %214 = vmatpush1.msra.mxu0 %v213
    %215 = vmatprep.subr.mxu0 0.0
    %v216 = vand.u32 %v157, 4294901760
    %217 = vmatpush1.msra.mxu0 %v216
    %218 = vmatprep.subr.mxu0 0.0
    %v219 = vand.u32 %v158, 4294901760
    %220 = vmatpush1.msra.mxu0 %v219
    %221 = vmatprep.subr.mxu0 0.0
    %v222 = vand.u32 %v159, 4294901760
    %223 = vmatpush1.msra.mxu0 %v222
    %224 = vmatprep.subr.mxu0 0.0
    %v225 = vand.u32 %v160, 4294901760
    %226 = vmatpush1.msra.mxu0 %v225
    %227 = vmatprep.subr.mxu0 0.0
    %v228 = vand.u32 %v161, 4294901760
    %229 = vmatpush1.msra.mxu0 %v228
    %230 = vmatprep.subr.mxu0 0.0
    %v231 = vand.u32 %v162, 4294901760
    %232 = vmatpush1.msra.mxu0 %v231
    %233 = vmatprep.subr.mxu0 0.0
    %v234 = vand.u32 %v163, 4294901760
    %235 = vmatpush1.msra.mxu0 %v234
    %236 = vmatprep.subr.mxu0 0.0
    %v237 = vand.u32 %v164, 4294901760
    %238 = vmatpush1.msra.mxu0 %v237
    %239 = vmatprep.subr.mxu0 0.0
    %v240 = vand.u32 %v165, 4294901760
    %241 = vmatpush1.msra.mxu0 %v240
    %242 = vmatprep.subr.mxu0 0.0
    %v243 = vand.u32 %v166, 4294901760
    %244 = vmatpush1.msra.mxu0 %v243
    %245 = vmatprep.subr.mxu0 0.0
    %v246 = vand.u32 %v167, 4294901760
    %247 = vmatpush1.msra.mxu0 %v246
    %248 = vmatprep.subr.mxu0 0.0
    %v249 = vand.u32 %v168, 4294901760
    %250 = vmatpush1.msra.mxu0 %v249
    %251 = vmatprep.subr.mxu0 0.0
    %v252 = vand.u32 %v169, 4294901760
    %253 = vmatpush1.msra.mxu0 %v252
    %254 = vmatprep.subr.mxu0 0.0
    %v255 = vand.u32 %v170, 4294901760
    %256 = vmatpush1.msra.mxu0 %v255
    %257 = vmatprep.subr.mxu0 0.0
    %v258 = vand.u32 %v171, 4294901760
    %259 = vmatpush1.msra.mxu0 %v258
    %260 = vmatprep.subr.mxu0 0.0
    %v261 = vand.u32 %v172, 4294901760
    %262 = vmatpush1.msra.mxu0 %v261
    %263 = vmatprep.subr.mxu0 0.0
    %v264 = vand.u32 %v173, 4294901760
    %265 = vmatpush1.msra.mxu0 %v264
    %266 = vmatprep.subr.mxu0 0.0
    %v267 = vand.u32 %v174, 4294901760
    %268 = vmatpush1.msra.mxu0 %v267
    %269 = vmatprep.subr.mxu0 0.0
    %v270 = vand.u32 %v175, 4294901760
    %271 = vmatpush1.msra.mxu0 %v270
    %272 = vmatprep.subr.mxu0 0.0
    %v273 = vand.u32 %v176, 4294901760
    %274 = vmatpush1.msra.mxu0 %v273
    %275 = vmatprep.subr.mxu0 0.0
    %v276 = vand.u32 %v177, 4294901760
    %277 = vmatpush1.msra.mxu0 %v276
    %278 = vmatprep.subr.mxu0 0.0
    %v279 = vand.u32 %v178, 4294901760
    %280 = vmatpush1.msra.mxu0 %v279
    %281 = vmatprep.subr.mxu0 0.0
    %v282 = vand.u32 %v179, 4294901760
    %283 = vmatpush1.msra.mxu0 %v282
    %284 = vmatprep.subr.mxu0 0.0
    %v285 = vand.u32 %v180, 4294901760
    %286 = vmatpush1.msra.mxu0 %v285
    %287 = vmatprep.subr.mxu0 0.0
    %v288 = vand.u32 %v181, 4294901760
    %289 = vmatpush1.msra.mxu0 %v288
    %290 = vmatprep.subr.mxu0 0.0
    %v291 = vand.u32 %v182, 4294901760
    %292 = vmatpush1.msra.mxu0 %v291
    %293 = vmatprep.subr.mxu0 0.0
    %v294 = vand.u32 %v183, 4294901760
    %295 = vmatpush1.msra.mxu0 %v294
    %v296 = vsub.f32 %v121, %v121
    %v297 = vand.u32 %v296, 4294901760
    %v298 = vsub.f32 %v296, %v297
    %v299 = vand.u32 %v298, 4294901760
    %300 = vmatprep.mubr.f32.mxu0 %v299
    %v301 = vsub.f32 %v120, %v120
    %v302 = vand.u32 %v301, 4294901760
    %v303 = vsub.f32 %v301, %v302
    %v304 = vand.u32 %v303, 4294901760
    %305 = vmatmul.mubr.f32.gmra.mrb[0].mxu0 %v304
    %v306 = vpop.f32.mrb[0].mxu0
    %v307 = vadd.f32 %v184, %v306
    %v308 = vpop.f32.mrb[0].mxu0
    %v309 = vsub.f32 %v123, %v123
    %v310 = vand.u32 %v309, 4294901760
    %v311 = vsub.f32 %v309, %v310
    %v312 = vand.u32 %v311, 4294901760
    %313 = vmatprep.mubr.f32.mxu0 %v312
    %v314 = vsub.f32 %v122, %v122
    %v315 = vand.u32 %v314, 4294901760
    %v316 = vsub.f32 %v314, %v315
    %v317 = vand.u32 %v316, 4294901760
    %318 = vmatmul.mubr.f32.gmra.mrb[0].mxu0 %v317
    %v319 = vpop.f32.mrb[0].mxu0
    %v320 = vadd.f32 %v185, %v319
    %v321 = vpop.f32.mrb[0].mxu0
    %v322 = vsub.f32 %v125, %v125
    %v323 = vand.u32 %v322, 4294901760
    %v324 = vsub.f32 %v322, %v323
    %v325 = vand.u32 %v324, 4294901760
    %326 = vmatprep.mubr.f32.mxu0 %v325
    %v327 = vsub.f32 %v124, %v124
    %v328 = vand.u32 %v327, 4294901760
    %v329 = vsub.f32 %v327, %v328
    %v330 = vand.u32 %v329, 4294901760
    %331 = vmatmul.mubr.f32.gmra.mrb[0].mxu0 %v330
    %v332 = vpop.f32.mrb[0].mxu0
    %v333 = vadd.f32 %v186, %v332
    %v334 = vpop.f32.mrb[0].mxu0
    %v335 = vsub.f32 %v127, %v127
    %v336 = vand.u32 %v335, 4294901760
    %v337 = vsub.f32 %v335, %v336
    %v338 = vand.u32 %v337, 4294901760
    %339 = vmatprep.mubr.f32.mxu0 %v338
    %v340 = vsub.f32 %v126, %v126
    %v341 = vand.u32 %v340, 4294901760
    %v342 = vsub.f32 %v340, %v341
    %v343 = vand.u32 %v342, 4294901760
    %344 = vmatmul.mubr.f32.gmra.mrb[0].mxu0 %v343
    %v345 = vpop.f32.mrb[0].mxu0
    %v346 = vadd.f32 %v187, %v345
    %v347 = vpop.f32.mrb[0].mxu0
    %v348 = vsub.f32 %v129, %v129
    %v349 = vand.u32 %v348, 4294901760
    %v350 = vsub.f32 %v348, %v349
    %v351 = vand.u32 %v350, 4294901760
    %352 = vmatprep.mubr.f32.mxu0 %v351
    %v353 = vsub.f32 %v128, %v128
    %v354 = vand.u32 %v353, 4294901760
    %v355 = vsub.f32 %v353, %v354
    %v356 = vand.u32 %v355, 4294901760
    %357 = vmatmul.mubr.f32.gmra.mrb[0].mxu0 %v356
    %v358 = vpop.f32.mrb[0].mxu0
    %v359 = vadd.f32 %v188, %v358
    %v360 = vpop.f32.mrb[0].mxu0
    %v361 = vsub.f32 %v131, %v131
    %v362 = vand.u32 %v361, 4294901760
    %v363 = vsub.f32 %v361, %v362
    %v364 = vand.u32 %v363, 4294901760
    %365 = vmatprep.mubr.f32.mxu0 %v364
    %v366 = vsub.f32 %v130, %v130
    %v367 = vand.u32 %v366, 4294901760
    %v368 = vsub.f32 %v366, %v367
    %v369 = vand.u32 %v368, 4294901760
    %370 = vmatmul.mubr.f32.gmra.mrb[0].mxu0 %v369
    %v371 = vpop.f32.mrb[0].mxu0
    %v372 = vadd.f32 %v189, %v371
    %v373 = vpop.f32.mrb[0].mxu0
    %v374 = vsub.f32 %v133, %v133
    %v375 = vand.u32 %v374, 4294901760
    %v376 = vsub.f32 %v374, %v375
    %v377 = vand.u32 %v376, 4294901760
    %378 = vmatprep.mubr.f32.mxu0 %v377
    %v379 = vsub.f32 %v132, %v132
    %v380 = vand.u32 %v379, 4294901760
    %v381 = vsub.f32 %v379, %v380
    %v382 = vand.u32 %v381, 4294901760
    %383 = vmatmul.mubr.f32.gmra.mrb[0].mxu0 %v382
    %v384 = vpop.f32.mrb[0].mxu0
    %v385 = vadd.f32 %v190, %v384
    %v386 = vpop.f32.mrb[0].mxu0
    %v387 = vsub.f32 %v135, %v135
    %v388 = vand.u32 %v387, 4294901760
    %v389 = vsub.f32 %v387, %v388
    %v390 = vand.u32 %v389, 4294901760
    %391 = vmatprep.mubr.f32.mxu0 %v390
    %v392 = vsub.f32 %v134, %v134
    %v393 = vand.u32 %v392, 4294901760
    %v394 = vsub.f32 %v392, %v393
    %v395 = vand.u32 %v394, 4294901760
    %396 = vmatmul.mubr.f32.gmra.mrb[0].mxu0 %v395
    %v397 = vpop.f32.mrb[0].mxu0
    %v398 = vadd.f32 %v191, %v397
    %v399 = vpop.f32.mrb[0].mxu0
    %v400 = vsub.f32 %v137, %v137
    %v401 = vand.u32 %v400, 4294901760
    %v402 = vsub.f32 %v400, %v401
    %v403 = vand.u32 %v402, 4294901760
    %404 = vmatprep.mubr.f32.mxu0 %v403
    %v405 = vsub.f32 %v136, %v136
    %v406 = vand.u32 %v405, 4294901760
    %v407 = vsub.f32 %v405, %v406
    %v408 = vand.u32 %v407, 4294901760
    %409 = vmatmul.mubr.f32.gmra.mrb[0].mxu0 %v408
    %v410 = vpop.f32.mrb[0].mxu0
    %v411 = vadd.f32 %v192, %v410
    %v412 = vpop.f32.mrb[0].mxu0
    %v413 = vsub.f32 %v139, %v139
    %v414 = vand.u32 %v413, 4294901760
    %v415 = vsub.f32 %v413, %v414
    %v416 = vand.u32 %v415, 4294901760
    %417 = vmatprep.mubr.f32.mxu0 %v416
    %v418 = vsub.f32 %v138, %v138
    %v419 = vand.u32 %v418, 4294901760
    %v420 = vsub.f32 %v418, %v419
    %v421 = vand.u32 %v420, 4294901760
    %422 = vmatmul.mubr.f32.gmra.mrb[0].mxu0 %v421
    %v423 = vpop.f32.mrb[0].mxu0
    %v424 = vadd.f32 %v193, %v423
    %v425 = vpop.f32.mrb[0].mxu0
    %v426 = vsub.f32 %v141, %v141
    %v427 = vand.u32 %v426, 4294901760
    %v428 = vsub.f32 %v426, %v427
    %v429 = vand.u32 %v428, 4294901760
    %430 = vmatprep.mubr.f32.mxu0 %v429
    %v431 = vsub.f32 %v140, %v140
    %v432 = vand.u32 %v431, 4294901760
    %v433 = vsub.f32 %v431, %v432
    %v434 = vand.u32 %v433, 4294901760
    %435 = vmatmul.mubr.f32.gmra.mrb[0].mxu0 %v434
    %v436 = vpop.f32.mrb[0].mxu0
    %v437 = vadd.f32 %v194, %v436
    %v438 = vpop.f32.mrb[0].mxu0
    %v439 = vsub.f32 %v143, %v143
    %v440 = vand.u32 %v439, 4294901760
    %v441 = vsub.f32 %v439, %v440
    %v442 = vand.u32 %v441, 4294901760
    %443 = vmatprep.mubr.f32.mxu0 %v442
    %v444 = vsub.f32 %v142, %v142
    %v445 = vand.u32 %v444, 4294901760
    %v446 = vsub.f32 %v444, %v445
    %v447 = vand.u32 %v446, 4294901760
    %448 = vmatmul.mubr.f32.gmra.mrb[0].mxu0 %v447
    %v449 = vpop.f32.mrb[0].mxu0
    %v450 = vadd.f32 %v195, %v449
    %v451 = vpop.f32.mrb[0].mxu0
    %v452 = vsub.f32 %v145, %v145
    %v453 = vand.u32 %v452, 4294901760
    %v454 = vsub.f32 %v452, %v453
    %v455 = vand.u32 %v454, 4294901760
    %456 = vmatprep.mubr.f32.mxu0 %v455
    %v457 = vsub.f32 %v144, %v144
    %v458 = vand.u32 %v457, 4294901760
    %v459 = vsub.f32 %v457, %v458
    %v460 = vand.u32 %v459, 4294901760
    %461 = vmatmul.mubr.f32.gmra.mrb[0].mxu0 %v460
    %v462 = vpop.f32.mrb[0].mxu0
    %v463 = vadd.f32 %v196, %v462
    %v464 = vpop.f32.mrb[0].mxu0
    %v465 = vsub.f32 %v147, %v147
    %v466 = vand.u32 %v465, 4294901760
    %v467 = vsub.f32 %v465, %v466
    %v468 = vand.u32 %v467, 4294901760
    %469 = vmatprep.mubr.f32.mxu0 %v468
    %v470 = vsub.f32 %v146, %v146
    %v471 = vand.u32 %v470, 4294901760
    %v472 = vsub.f32 %v470, %v471
    %v473 = vand.u32 %v472, 4294901760
    %474 = vmatmul.mubr.f32.gmra.mrb[0].mxu0 %v473
    %v475 = vpop.f32.mrb[0].mxu0
    %v476 = vadd.f32 %v197, %v475
    %v477 = vpop.f32.mrb[0].mxu0
    %v478 = vsub.f32 %v149, %v149
    %v479 = vand.u32 %v478, 4294901760
    %v480 = vsub.f32 %v478, %v479
    %v481 = vand.u32 %v480, 4294901760
    %482 = vmatprep.mubr.f32.mxu0 %v481
    %v483 = vsub.f32 %v148, %v148
    %v484 = vand.u32 %v483, 4294901760
    %v485 = vsub.f32 %v483, %v484
    %v486 = vand.u32 %v485, 4294901760
    %487 = vmatmul.mubr.f32.gmra.mrb[0].mxu0 %v486
    %v488 = vpop.f32.mrb[0].mxu0
    %v489 = vadd.f32 %v198, %v488
    %v490 = vpop.f32.mrb[0].mxu0
    %v491 = vsub.f32 %v151, %v151
    %v492 = vand.u32 %v491, 4294901760
    %v493 = vsub.f32 %v491, %v492
    %v494 = vand.u32 %v493, 4294901760
    %495 = vmatprep.mubr.f32.mxu0 %v494
    %v496 = vsub.f32 %v150, %v150
    %v497 = vand.u32 %v496, 4294901760
    %v498 = vsub.f32 %v496, %v497
    %v499 = vand.u32 %v498, 4294901760
    %500 = vmatmul.mubr.f32.gmra.mrb[0].mxu0 %v499
    %v501 = vpop.f32.mrb[0].mxu0
    %v502 = vadd.f32 %v199, %v501
    %v503 = vpop.f32.mrb[0].mxu0
    %504 = vdwg.mxu0
    %505 = vmatprep.subr.mxu0 0.0
    %v506 = vand.u32 %v152, 4294901760
    %v507 = vsub.f32 %v152, %v506
    %v508 = vand.u32 %v507, 4294901760
    %v509 = vsub.f32 %v507, %v508
    %v510 = vand.u32 %v509, 4294901760
    %511 = vmatpush1.msra.mxu0 %v510
    %512 = vmatprep.subr.mxu0 0.0
    %v513 = vand.u32 %v153, 4294901760
    %v514 = vsub.f32 %v153, %v513
    %v515 = vand.u32 %v514, 4294901760
    %v516 = vsub.f32 %v514, %v515
    %v517 = vand.u32 %v516, 4294901760
    %518 = vmatpush1.msra.mxu0 %v517
    %519 = vmatprep.subr.mxu0 0.0
    %v520 = vand.u32 %v154, 4294901760
    %v521 = vsub.f32 %v154, %v520
    %v522 = vand.u32 %v521, 4294901760
    %v523 = vsub.f32 %v521, %v522
    %v524 = vand.u32 %v523, 4294901760
    %525 = vmatpush1.msra.mxu0 %v524
    %526 = vmatprep.subr.mxu0 0.0
    %v527 = vand.u32 %v155, 4294901760
    %v528 = vsub.f32 %v155, %v527
    %v529 = vand.u32 %v528, 4294901760
    %v530 = vsub.f32 %v528, %v529
    %v531 = vand.u32 %v530, 4294901760
    %532 = vmatpush1.msra.mxu0 %v531
    %533 = vmatprep.subr.mxu0 0.0
    %v534 = vand.u32 %v156, 4294901760
    %v535 = vsub.f32 %v156, %v534
    %v536 = vand.u32 %v535, 4294901760
    %v537 = vsub.f32 %v535, %v536
    %v538 = vand.u32 %v537, 4294901760
    %539 = vmatpush1.msra.mxu0 %v538
    %540 = vmatprep.subr.mxu0 0.0
    %v541 = vand.u32 %v157, 4294901760
    %v542 = vsub.f32 %v157, %v541
    %v543 = vand.u32 %v542, 4294901760
    %v544 = vsub.f32 %v542, %v543
    %v545 = vand.u32 %v544, 4294901760
    %546 = vmatpush1.msra.mxu0 %v545
    %547 = vmatprep.subr.mxu0 0.0
    %v548 = vand.u32 %v158, 4294901760
    %v549 = vsub.f32 %v158, %v548
    %v550 = vand.u32 %v549, 4294901760
    %v551 = vsub.f32 %v549, %v550
    %v552 = vand.u32 %v551, 4294901760
    %553 = vmatpush1.msra.mxu0 %v552
    %554 = vmatprep.subr.mxu0 0.0
    %v555 = vand.u32 %v159, 4294901760
    %v556 = vsub.f32 %v159, %v555
    %v557 = vand.u32 %v556, 4294901760
    %v558 = vsub.f32 %v556, %v557
    %v559 = vand.u32 %v558, 4294901760
    %560 = vmatpush1.msra.mxu0 %v559
    %561 = vmatprep.subr.mxu0 0.0
    %v562 = vand.u32 %v160, 4294901760
    %v563 = vsub.f32 %v160, %v562
    %v564 = vand.u32 %v563, 4294901760
    %v565 = vsub.f32 %v563, %v564
    %v566 = vand.u32 %v565, 4294901760
    %567 = vmatpush1.msra.mxu0 %v566
    %568 = vmatprep.subr.mxu0 0.0
    %v569 = vand.u32 %v161, 4294901760
    %v570 = vsub.f32 %v161, %v569
    %v571 = vand.u32 %v570, 4294901760
    %v572 = vsub.f32 %v570, %v571
    %v573 = vand.u32 %v572, 4294901760
    %574 = vmatpush1.msra.mxu0 %v573
    %575 = vmatprep.subr.mxu0 0.0
    %v576 = vand.u32 %v162, 4294901760
    %v577 = vsub.f32 %v162, %v576
    %v578 = vand.u32 %v577, 4294901760
    %v579 = vsub.f32 %v577, %v578
    %v580 = vand.u32 %v579, 4294901760
    %581 = vmatpush1.msra.mxu0 %v580
    %582 = vmatprep.subr.mxu0 0.0
    %v583 = vand.u32 %v163, 4294901760
    %v584 = vsub.f32 %v163, %v583
    %v585 = vand.u32 %v584, 4294901760
    %v586 = vsub.f32 %v584, %v585
    %v587 = vand.u32 %v586, 4294901760
    %588 = vmatpush1.msra.mxu0 %v587
    %589 = vmatprep.subr.mxu0 0.0
    %v590 = vand.u32 %v164, 4294901760
    %v591 = vsub.f32 %v164, %v590
    %v592 = vand.u32 %v591, 4294901760
    %v593 = vsub.f32 %v591, %v592
    %v594 = vand.u32 %v593, 4294901760
    %595 = vmatpush1.msra.mxu0 %v594
    %596 = vmatprep.subr.mxu0 0.0
    %v597 = vand.u32 %v165, 4294901760
    %v598 = vsub.f32 %v165, %v597
    %v599 = vand.u32 %v598, 4294901760
    %v600 = vsub.f32 %v598, %v599
    %v601 = vand.u32 %v600, 4294901760
    %602 = vmatpush1.msra.mxu0 %v601
    %603 = vmatprep.subr.mxu0 0.0
    %v604 = vand.u32 %v166, 4294901760
    %v605 = vsub.f32 %v166, %v604
    %v606 = vand.u32 %v605, 4294901760
    %v607 = vsub.f32 %v605, %v606
    %v608 = vand.u32 %v607, 4294901760
    %609 = vmatpush1.msra.mxu0 %v608
    %610 = vmatprep.subr.mxu0 0.0
    %v611 = vand.u32 %v167, 4294901760
    %v612 = vsub.f32 %v167, %v611
    %v613 = vand.u32 %v612, 4294901760
    %v614 = vsub.f32 %v612, %v613
    %v615 = vand.u32 %v614, 4294901760
    %616 = vmatpush1.msra.mxu0 %v615
    %617 = vmatprep.subr.mxu0 0.0
    %v618 = vand.u32 %v168, 4294901760
    %v619 = vsub.f32 %v168, %v618
    %v620 = vand.u32 %v619, 4294901760
    %v621 = vsub.f32 %v619, %v620
    %v622 = vand.u32 %v621, 4294901760
    %623 = vmatpush1.msra.mxu0 %v622
    %624 = vmatprep.subr.mxu0 0.0
    %v625 = vand.u32 %v169, 4294901760
    %v626 = vsub.f32 %v169, %v625
    %v627 = vand.u32 %v626, 4294901760
    %v628 = vsub.f32 %v626, %v627
    %v629 = vand.u32 %v628, 4294901760
    %630 = vmatpush1.msra.mxu0 %v629
    %631 = vmatprep.subr.mxu0 0.0
    %v632 = vand.u32 %v170, 4294901760
    %v633 = vsub.f32 %v170, %v632
    %v634 = vand.u32 %v633, 4294901760
    %v635 = vsub.f32 %v633, %v634
    %v636 = vand.u32 %v635, 4294901760
    %637 = vmatpush1.msra.mxu0 %v636
    %638 = vmatprep.subr.mxu0 0.0
    %v639 = vand.u32 %v171, 4294901760
    %v640 = vsub.f32 %v171, %v639
    %v641 = vand.u32 %v640, 4294901760
    %v642 = vsub.f32 %v640, %v641
    %v643 = vand.u32 %v642, 4294901760
    %644 = vmatpush1.msra.mxu0 %v643
    %645 = vmatprep.subr.mxu0 0.0
    %v646 = vand.u32 %v172, 4294901760
    %v647 = vsub.f32 %v172, %v646
    %v648 = vand.u32 %v647, 4294901760
    %v649 = vsub.f32 %v647, %v648
    %v650 = vand.u32 %v649, 4294901760
    %651 = vmatpush1.msra.mxu0 %v650
    %652 = vmatprep.subr.mxu0 0.0
    %v653 = vand.u32 %v173, 4294901760
    %v654 = vsub.f32 %v173, %v653
    %v655 = vand.u32 %v654, 4294901760
    %v656 = vsub.f32 %v654, %v655
    %v657 = vand.u32 %v656, 4294901760
    %658 = vmatpush1.msra.mxu0 %v657
    %659 = vmatprep.subr.mxu0 0.0
    %v660 = vand.u32 %v174, 4294901760
    %v661 = vsub.f32 %v174, %v660
    %v662 = vand.u32 %v661, 4294901760
    %v663 = vsub.f32 %v661, %v662
    %v664 = vand.u32 %v663, 4294901760
    %665 = vmatpush1.msra.mxu0 %v664
    %666 = vmatprep.subr.mxu0 0.0
    %v667 = vand.u32 %v175, 4294901760
    %v668 = vsub.f32 %v175, %v667
    %v669 = vand.u32 %v668, 4294901760
    %v670 = vsub.f32 %v668, %v669
    %v671 = vand.u32 %v670, 4294901760
    %672 = vmatpush1.msra.mxu0 %v671
    %673 = vmatprep.subr.mxu0 0.0
    %v674 = vand.u32 %v176, 4294901760
    %v675 = vsub.f32 %v176, %v674
    %v676 = vand.u32 %v675, 4294901760
    %v677 = vsub.f32 %v675, %v676
    %v678 = vand.u32 %v677, 4294901760
    %679 = vmatpush1.msra.mxu0 %v678
    %680 = vmatprep.subr.mxu0 0.0
    %v681 = vand.u32 %v177, 4294901760
    %v682 = vsub.f32 %v177, %v681
    %v683 = vand.u32 %v682, 4294901760
    %v684 = vsub.f32 %v682, %v683
    %v685 = vand.u32 %v684, 4294901760
    %686 = vmatpush1.msra.mxu0 %v685
    %687 = vmatprep.subr.mxu0 0.0
    %v688 = vand.u32 %v178, 4294901760
    %v689 = vsub.f32 %v178, %v688
    %v690 = vand.u32 %v689, 4294901760
    %v691 = vsub.f32 %v689, %v690
    %v692 = vand.u32 %v691, 4294901760
    %693 = vmatpush1.msra.mxu0 %v692
    %694 = vmatprep.subr.mxu0 0.0
    %v695 = vand.u32 %v179, 4294901760
    %v696 = vsub.f32 %v179, %v695
    %v697 = vand.u32 %v696, 4294901760
    %v698 = vsub.f32 %v696, %v697
    %v699 = vand.u32 %v698, 4294901760
    %700 = vmatpush1.msra.mxu0 %v699
    %701 = vmatprep.subr.mxu0 0.0
    %v702 = vand.u32 %v180, 4294901760
    %v703 = vsub.f32 %v180, %v702
    %v704 = vand.u32 %v703, 4294901760
    %v705 = vsub.f32 %v703, %v704
    %v706 = vand.u32 %v705, 4294901760
    %707 = vmatpush1.msra.mxu0 %v706
    %708 = vmatprep.subr.mxu0 0.0
    %v709 = vand.u32 %v181, 4294901760
    %v710 = vsub.f32 %v181, %v709
    %v711 = vand.u32 %v710, 4294901760
    %v712 = vsub.f32 %v710, %v711
    %v713 = vand.u32 %v712, 4294901760
    %714 = vmatpush1.msra.mxu0 %v713
    %715 = vmatprep.subr.mxu0 0.0
    %v716 = vand.u32 %v182, 4294901760
    %v717 = vsub.f32 %v182, %v716
    %v718 = vand.u32 %v717, 4294901760
    %v719 = vsub.f32 %v717, %v718
    %v720 = vand.u32 %v719, 4294901760
    %721 = vmatpush1.msra.mxu0 %v720
    %722 = vmatprep.subr.mxu0 0.0
    %v723 = vand.u32 %v183, 4294901760
    %v724 = vsub.f32 %v183, %v723
    %v725 = vand.u32 %v724, 4294901760
    %v726 = vsub.f32 %v724, %v725
    %v727 = vand.u32 %v726, 4294901760
    %728 = vmatpush1.msra.mxu0 %v727
    %729 = vmatprep.mubr.f32.mxu0 %v121
    %730 = vmatmul.mubr.f32.gmra.mrb[0].mxu0 %v120
    %v731 = vpop.f32.mrb[0].mxu0
    %v732 = vadd.f32 %v307, %v731
    %v733 = vpop.f32.mrb[0].mxu0
    %734 = vmatprep.mubr.f32.mxu0 %v123
    %735 = vmatmul.mubr.f32.gmra.mrb[0].mxu0 %v122
    %v736 = vpop.f32.mrb[0].mxu0
    %v737 = vadd.f32 %v320, %v736
    %v738 = vpop.f32.mrb[0].mxu0
    %739 = vmatprep.mubr.f32.mxu0 %v125
    %740 = vmatmul.mubr.f32.gmra.mrb[0].mxu0 %v124
    %v741 = vpop.f32.mrb[0].mxu0
    %v742 = vadd.f32 %v333, %v741
    %v743 = vpop.f32.mrb[0].mxu0
    %744 = vmatprep.mubr.f32.mxu0 %v127
    %745 = vmatmul.mubr.f32.gmra.mrb[0].mxu0 %v126
    %v746 = vpop.f32.mrb[0].mxu0
    %v747 = vadd.f32 %v346, %v746
    %v748 = vpop.f32.mrb[0].mxu0
    %749 = vmatprep.mubr.f32.mxu0 %v129
    %750 = vmatmul.mubr.f32.gmra.mrb[0].mxu0 %v128
    %v751 = vpop.f32.mrb[0].mxu0
    %v752 = vadd.f32 %v359, %v751
    %v753 = vpop.f32.mrb[0].mxu0
    %754 = vmatprep.mubr.f32.mxu0 %v131
    %755 = vmatmul.mubr.f32.gmra.mrb[0].mxu0 %v130
    %v756 = vpop.f32.mrb[0].mxu0
    %v757 = vadd.f32 %v372, %v756
    %v758 = vpop.f32.mrb[0].mxu0
    %759 = vmatprep.mubr.f32.mxu0 %v133
    %760 = vmatmul.mubr.f32.gmra.mrb[0].mxu0 %v132
    %v761 = vpop.f32.mrb[0].mxu0
    %v762 = vadd.f32 %v385, %v761
    %v763 = vpop.f32.mrb[0].mxu0
    %764 = vmatprep.mubr.f32.mxu0 %v135
    %765 = vmatmul.mubr.f32.gmra.mrb[0].mxu0 %v134
    %v766 = vpop.f32.mrb[0].mxu0
    %v767 = vadd.f32 %v398, %v766
    %v768 = vpop.f32.mrb[0].mxu0
    %769 = vmatprep.mubr.f32.mxu0 %v137
    %770 = vmatmul.mubr.f32.gmra.mrb[0].mxu0 %v136
    %v771 = vpop.f32.mrb[0].mxu0
    %v772 = vadd.f32 %v411, %v771
    %v773 = vpop.f32.mrb[0].mxu0
    %774 = vmatprep.mubr.f32.mxu0 %v139
    %775 = vmatmul.mubr.f32.gmra.mrb[0].mxu0 %v138
    %v776 = vpop.f32.mrb[0].mxu0
    %v777 = vadd.f32 %v424, %v776
    %v778 = vpop.f32.mrb[0].mxu0
    %779 = vmatprep.mubr.f32.mxu0 %v141
    %780 = vmatmul.mubr.f32.gmra.mrb[0].mxu0 %v140
    %v781 = vpop.f32.mrb[0].mxu0
    %v782 = vadd.f32 %v437, %v781
    %v783 = vpop.f32.mrb[0].mxu0
    %784 = vmatprep.mubr.f32.mxu0 %v143
    %785 = vmatmul.mubr.f32.gmra.mrb[0].mxu0 %v142
    %v786 = vpop.f32.mrb[0].mxu0
    %v787 = vadd.f32 %v450, %v786
    %v788 = vpop.f32.mrb[0].mxu0
    %789 = vmatprep.mubr.f32.mxu0 %v145
    %790 = vmatmul.mubr.f32.gmra.mrb[0].mxu0 %v144
    %v791 = vpop.f32.mrb[0].mxu0
    %v792 = vadd.f32 %v463, %v791
    %v793 = vpop.f32.mrb[0].mxu0
    %794 = vmatprep.mubr.f32.mxu0 %v147
    %795 = vmatmul.mubr.f32.gmra.mrb[0].mxu0 %v146
    %v796 = vpop.f32.mrb[0].mxu0
    %v797 = vadd.f32 %v476, %v796
    %v798 = vpop.f32.mrb[0].mxu0
    %799 = vmatprep.mubr.f32.mxu0 %v149
    %800 = vmatmul.mubr.f32.gmra.mrb[0].mxu0 %v148
    %v801 = vpop.f32.mrb[0].mxu0
    %v802 = vadd.f32 %v489, %v801
    %v803 = vpop.f32.mrb[0].mxu0
    %804 = vmatprep.mubr.f32.mxu0 %v151
    %805 = vmatmul.mubr.f32.gmra.mrb[0].mxu0 %v150
    %v806 = vpop.f32.mrb[0].mxu0
    %v807 = vadd.f32 %v502, %v806
    %v808 = vpop.f32.mrb[0].mxu0
    %809 = vdwg.mxu0
    %810 = vmatprep.subr.mxu0 0.0
    %v811 = vand.u32 %v152, 4294901760
    %v812 = vsub.f32 %v152, %v811
    %813 = vmatpush1.msra.mxu0 %v812
    %814 = vmatprep.subr.mxu0 0.0
    %v815 = vand.u32 %v153, 4294901760
    %v816 = vsub.f32 %v153, %v815
    %817 = vmatpush1.msra.mxu0 %v816
    %818 = vmatprep.subr.mxu0 0.0
    %v819 = vand.u32 %v154, 4294901760
    %v820 = vsub.f32 %v154, %v819
    %821 = vmatpush1.msra.mxu0 %v820
    %822 = vmatprep.subr.mxu0 0.0
    %v823 = vand.u32 %v155, 4294901760
    %v824 = vsub.f32 %v155, %v823
    %825 = vmatpush1.msra.mxu0 %v824
    %826 = vmatprep.subr.mxu0 0.0
    %v827 = vand.u32 %v156, 4294901760
    %v828 = vsub.f32 %v156, %v827
    %829 = vmatpush1.msra.mxu0 %v828
    %830 = vmatprep.subr.mxu0 0.0
    %v831 = vand.u32 %v157, 4294901760
    %v832 = vsub.f32 %v157, %v831
    %833 = vmatpush1.msra.mxu0 %v832
    %834 = vmatprep.subr.mxu0 0.0
    %v835 = vand.u32 %v158, 4294901760
    %v836 = vsub.f32 %v158, %v835
    %837 = vmatpush1.msra.mxu0 %v836
    %838 = vmatprep.subr.mxu0 0.0
    %v839 = vand.u32 %v159, 4294901760
    %v840 = vsub.f32 %v159, %v839
    %841 = vmatpush1.msra.mxu0 %v840
    %842 = vmatprep.subr.mxu0 0.0
    %v843 = vand.u32 %v160, 4294901760
    %v844 = vsub.f32 %v160, %v843
    %845 = vmatpush1.msra.mxu0 %v844
    %846 = vmatprep.subr.mxu0 0.0
    %v847 = vand.u32 %v161, 4294901760
    %v848 = vsub.f32 %v161, %v847
    %849 = vmatpush1.msra.mxu0 %v848
    %850 = vmatprep.subr.mxu0 0.0
    %v851 = vand.u32 %v162, 4294901760
    %v852 = vsub.f32 %v162, %v851
    %853 = vmatpush1.msra.mxu0 %v852
    %854 = vmatprep.subr.mxu0 0.0
    %v855 = vand.u32 %v163, 4294901760
    %v856 = vsub.f32 %v163, %v855
    %857 = vmatpush1.msra.mxu0 %v856
    %858 = vmatprep.subr.mxu0 0.0
    %v859 = vand.u32 %v164, 4294901760
    %v860 = vsub.f32 %v164, %v859
    %861 = vmatpush1.msra.mxu0 %v860
    %862 = vmatprep.subr.mxu0 0.0
    %v863 = vand.u32 %v165, 4294901760
    %v864 = vsub.f32 %v165, %v863
    %865 = vmatpush1.msra.mxu0 %v864
    %866 = vmatprep.subr.mxu0 0.0
    %v867 = vand.u32 %v166, 4294901760
    %v868 = vsub.f32 %v166, %v867
    %869 = vmatpush1.msra.mxu0 %v868
    %870 = vmatprep.subr.mxu0 0.0
    %v871 = vand.u32 %v167, 4294901760
    %v872 = vsub.f32 %v167, %v871
    %873 = vmatpush1.msra.mxu0 %v872
    %874 = vmatprep.subr.mxu0 0.0
    %v875 = vand.u32 %v168, 4294901760
    %v876 = vsub.f32 %v168, %v875
    %877 = vmatpush1.msra.mxu0 %v876
    %878 = vmatprep.subr.mxu0 0.0
    %v879 = vand.u32 %v169, 4294901760
    %v880 = vsub.f32 %v169, %v879
    %881 = vmatpush1.msra.mxu0 %v880
    %882 = vmatprep.subr.mxu0 0.0
    %v883 = vand.u32 %v170, 4294901760
    %v884 = vsub.f32 %v170, %v883
    %885 = vmatpush1.msra.mxu0 %v884
    %886 = vmatprep.subr.mxu0 0.0
    %v887 = vand.u32 %v171, 4294901760
    %v888 = vsub.f32 %v171, %v887
    %889 = vmatpush1.msra.mxu0 %v888
    %890 = vmatprep.subr.mxu0 0.0
    %v891 = vand.u32 %v172, 4294901760
    %v892 = vsub.f32 %v172, %v891
    %893 = vmatpush1.msra.mxu0 %v892
    %894 = vmatprep.subr.mxu0 0.0
    %v895 = vand.u32 %v173, 4294901760
    %v896 = vsub.f32 %v173, %v895
    %897 = vmatpush1.msra.mxu0 %v896
    %898 = vmatprep.subr.mxu0 0.0
    %v899 = vand.u32 %v174, 4294901760
    %v900 = vsub.f32 %v174, %v899
    %901 = vmatpush1.msra.mxu0 %v900
    %902 = vmatprep.subr.mxu0 0.0
    %v903 = vand.u32 %v175, 4294901760
    %v904 = vsub.f32 %v175, %v903
    %905 = vmatpush1.msra.mxu0 %v904
    %906 = vmatprep.subr.mxu0 0.0
    %v907 = vand.u32 %v176, 4294901760
    %v908 = vsub.f32 %v176, %v907
    %909 = vmatpush1.msra.mxu0 %v908
    %910 = vmatprep.subr.mxu0 0.0
    %v911 = vand.u32 %v177, 4294901760
    %v912 = vsub.f32 %v177, %v911
    %913 = vmatpush1.msra.mxu0 %v912
    %914 = vmatprep.subr.mxu0 0.0
    %v915 = vand.u32 %v178, 4294901760
    %v916 = vsub.f32 %v178, %v915
    %917 = vmatpush1.msra.mxu0 %v916
    %918 = vmatprep.subr.mxu0 0.0
    %v919 = vand.u32 %v179, 4294901760
    %v920 = vsub.f32 %v179, %v919
    %921 = vmatpush1.msra.mxu0 %v920
    %922 = vmatprep.subr.mxu0 0.0
    %v923 = vand.u32 %v180, 4294901760
    %v924 = vsub.f32 %v180, %v923
    %925 = vmatpush1.msra.mxu0 %v924
    %926 = vmatprep.subr.mxu0 0.0
    %v927 = vand.u32 %v181, 4294901760
    %v928 = vsub.f32 %v181, %v927
    %929 = vmatpush1.msra.mxu0 %v928
    %930 = vmatprep.subr.mxu0 0.0
    %v931 = vand.u32 %v182, 4294901760
    %v932 = vsub.f32 %v182, %v931
    %933 = vmatpush1.msra.mxu0 %v932
    %934 = vmatprep.subr.mxu0 0.0
    %v935 = vand.u32 %v183, 4294901760
    %v936 = vsub.f32 %v183, %v935
    %937 = vmatpush1.msra.mxu0 %v936
    %v938 = vsub.f32 %v121, %v121
    %939 = vmatprep.mubr.f32.mxu0 %v938
    %v940 = vsub.f32 %v120, %v120
    %941 = vmatmul.mubr.f32.gmra.mrb[0].mxu0 %v940
    %v942 = vpop.f32.mrb[0].mxu0
    %v943 = vadd.f32 %v732, %v942
    %v944 = vpop.f32.mrb[0].mxu0
    %v945 = vsub.f32 %v123, %v123
    %946 = vmatprep.mubr.f32.mxu0 %v945
    %v947 = vsub.f32 %v122, %v122
    %948 = vmatmul.mubr.f32.gmra.mrb[0].mxu0 %v947
    %v949 = vpop.f32.mrb[0].mxu0
    %v950 = vadd.f32 %v737, %v949
    %v951 = vpop.f32.mrb[0].mxu0
    %v952 = vsub.f32 %v125, %v125
    %953 = vmatprep.mubr.f32.mxu0 %v952
    %v954 = vsub.f32 %v124, %v124
    %955 = vmatmul.mubr.f32.gmra.mrb[0].mxu0 %v954
    %v956 = vpop.f32.mrb[0].mxu0
    %v957 = vadd.f32 %v742, %v956
    %v958 = vpop.f32.mrb[0].mxu0
    %v959 = vsub.f32 %v127, %v127
    %960 = vmatprep.mubr.f32.mxu0 %v959
    %v961 = vsub.f32 %v126, %v126
    %962 = vmatmul.mubr.f32.gmra.mrb[0].mxu0 %v961
    %v963 = vpop.f32.mrb[0].mxu0
    %v964 = vadd.f32 %v747, %v963
    %v965 = vpop.f32.mrb[0].mxu0
    %v966 = vsub.f32 %v129, %v129
    %967 = vmatprep.mubr.f32.mxu0 %v966
    %v968 = vsub.f32 %v128, %v128
    %969 = vmatmul.mubr.f32.gmra.mrb[0].mxu0 %v968
    %v970 = vpop.f32.mrb[0].mxu0
    %v971 = vadd.f32 %v752, %v970
    %v972 = vpop.f32.mrb[0].mxu0
    %v973 = vsub.f32 %v131, %v131
    %974 = vmatprep.mubr.f32.mxu0 %v973
    %v975 = vsub.f32 %v130, %v130
    %976 = vmatmul.mubr.f32.gmra.mrb[0].mxu0 %v975
    %v977 = vpop.f32.mrb[0].mxu0
    %v978 = vadd.f32 %v757, %v977
    %v979 = vpop.f32.mrb[0].mxu0
    %v980 = vsub.f32 %v133, %v133
    %981 = vmatprep.mubr.f32.mxu0 %v980
    %v982 = vsub.f32 %v132, %v132
    %983 = vmatmul.mubr.f32.gmra.mrb[0].mxu0 %v982
    %v984 = vpop.f32.mrb[0].mxu0
    %v985 = vadd.f32 %v762, %v984
    %v986 = vpop.f32.mrb[0].mxu0
    %v987 = vsub.f32 %v135, %v135
    %988 = vmatprep.mubr.f32.mxu0 %v987
    %v989 = vsub.f32 %v134, %v134
    %990 = vmatmul.mubr.f32.gmra.mrb[0].mxu0 %v989
    %v991 = vpop.f32.mrb[0].mxu0
    %v992 = vadd.f32 %v767, %v991
    %v993 = vpop.f32.mrb[0].mxu0
    %v994 = vsub.f32 %v137, %v137
    %995 = vmatprep.mubr.f32.mxu0 %v994
    %v996 = vsub.f32 %v136, %v136
    %997 = vmatmul.mubr.f32.gmra.mrb[0].mxu0 %v996
    %v998 = vpop.f32.mrb[0].mxu0
    %v999 = vadd.f32 %v772, %v998
    %v1000 = vpop.f32.mrb[0].mxu0
    %v1001 = vsub.f32 %v139, %v139
    %1002 = vmatprep.mubr.f32.mxu0 %v1001
    %v1003 = vsub.f32 %v138, %v138
    %1004 = vmatmul.mubr.f32.gmra.mrb[0].mxu0 %v1003
    %v1005 = vpop.f32.mrb[0].mxu0
    %v1006 = vadd.f32 %v777, %v1005
    %v1007 = vpop.f32.mrb[0].mxu0
    %v1008 = vsub.f32 %v141, %v141
    %1009 = vmatprep.mubr.f32.mxu0 %v1008
    %v1010 = vsub.f32 %v140, %v140
    %1011 = vmatmul.mubr.f32.gmra.mrb[0].mxu0 %v1010
    %v1012 = vpop.f32.mrb[0].mxu0
    %v1013 = vadd.f32 %v782, %v1012
    %v1014 = vpop.f32.mrb[0].mxu0
    %v1015 = vsub.f32 %v143, %v143
    %1016 = vmatprep.mubr.f32.mxu0 %v1015
    %v1017 = vsub.f32 %v142, %v142
    %1018 = vmatmul.mubr.f32.gmra.mrb[0].mxu0 %v1017
    %v1019 = vpop.f32.mrb[0].mxu0
    %v1020 = vadd.f32 %v787, %v1019
    %v1021 = vpop.f32.mrb[0].mxu0
    %v1022 = vsub.f32 %v145, %v145
    %1023 = vmatprep.mubr.f32.mxu0 %v1022
    %v1024 = vsub.f32 %v144, %v144
    %1025 = vmatmul.mubr.f32.gmra.mrb[0].mxu0 %v1024
    %v1026 = vpop.f32.mrb[0].mxu0
    %v1027 = vadd.f32 %v792, %v1026
    %v1028 = vpop.f32.mrb[0].mxu0
    %v1029 = vsub.f32 %v147, %v147
    %1030 = vmatprep.mubr.f32.mxu0 %v1029
    %v1031 = vsub.f32 %v146, %v146
    %1032 = vmatmul.mubr.f32.gmra.mrb[0].mxu0 %v1031
    %v1033 = vpop.f32.mrb[0].mxu0
    %v1034 = vadd.f32 %v797, %v1033
    %v1035 = vpop.f32.mrb[0].mxu0
    %v1036 = vsub.f32 %v149, %v149
    %1037 = vmatprep.mubr.f32.mxu0 %v1036
    %v1038 = vsub.f32 %v148, %v148
    %1039 = vmatmul.mubr.f32.gmra.mrb[0].mxu0 %v1038
    %v1040 = vpop.f32.mrb[0].mxu0
    %v1041 = vadd.f32 %v802, %v1040
    %v1042 = vpop.f32.mrb[0].mxu0
    %v1043 = vsub.f32 %v151, %v151
    %1044 = vmatprep.mubr.f32.mxu0 %v1043
    %v1045 = vsub.f32 %v150, %v150
    %1046 = vmatmul.mubr.f32.gmra.mrb[0].mxu0 %v1045
    %v1047 = vpop.f32.mrb[0].mxu0
    %v1048 = vadd.f32 %v807, %v1047
    %v1049 = vpop.f32.mrb[0].mxu0
    %1050 = vdwg.mxu0
    %1051 = vmatprep.subr.mxu0 0.0
    %v1052 = vand.u32 %v152, 4294901760
    %1053 = vmatpush1.msra.mxu0 %v1052
    %1054 = vmatprep.subr.mxu0 0.0
    %v1055 = vand.u32 %v153, 4294901760
    %1056 = vmatpush1.msra.mxu0 %v1055
    %1057 = vmatprep.subr.mxu0 0.0
    %v1058 = vand.u32 %v154, 4294901760
    %1059 = vmatpush1.msra.mxu0 %v1058
    %1060 = vmatprep.subr.mxu0 0.0
    %v1061 = vand.u32 %v155, 4294901760
    %1062 = vmatpush1.msra.mxu0 %v1061
    %1063 = vmatprep.subr.mxu0 0.0
    %v1064 = vand.u32 %v156, 4294901760
    %1065 = vmatpush1.msra.mxu0 %v1064
    %1066 = vmatprep.subr.mxu0 0.0
    %v1067 = vand.u32 %v157, 4294901760
    %1068 = vmatpush1.msra.mxu0 %v1067
    %1069 = vmatprep.subr.mxu0 0.0
    %v1070 = vand.u32 %v158, 4294901760
    %1071 = vmatpush1.msra.mxu0 %v1070
    %1072 = vmatprep.subr.mxu0 0.0
    %v1073 = vand.u32 %v159, 4294901760
    %1074 = vmatpush1.msra.mxu0 %v1073
    %1075 = vmatprep.subr.mxu0 0.0
    %v1076 = vand.u32 %v160, 4294901760
    %1077 = vmatpush1.msra.mxu0 %v1076
    %1078 = vmatprep.subr.mxu0 0.0
    %v1079 = vand.u32 %v161, 4294901760
    %1080 = vmatpush1.msra.mxu0 %v1079
    %1081 = vmatprep.subr.mxu0 0.0
    %v1082 = vand.u32 %v162, 4294901760
    %1083 = vmatpush1.msra.mxu0 %v1082
    %1084 = vmatprep.subr.mxu0 0.0
    %v1085 = vand.u32 %v163, 4294901760
    %1086 = vmatpush1.msra.mxu0 %v1085
    %1087 = vmatprep.subr.mxu0 0.0
    %v1088 = vand.u32 %v164, 4294901760
    %1089 = vmatpush1.msra.mxu0 %v1088
    %1090 = vmatprep.subr.mxu0 0.0
    %v1091 = vand.u32 %v165, 4294901760
    %1092 = vmatpush1.msra.mxu0 %v1091
    %1093 = vmatprep.subr.mxu0 0.0
    %v1094 = vand.u32 %v166, 4294901760
    %1095 = vmatpush1.msra.mxu0 %v1094
    %1096 = vmatprep.subr.mxu0 0.0
    %v1097 = vand.u32 %v167, 4294901760
    %1098 = vmatpush1.msra.mxu0 %v1097
    %1099 = vmatprep.subr.mxu0 0.0
    %v1100 = vand.u32 %v168, 4294901760
    %1101 = vmatpush1.msra.mxu0 %v1100
    %1102 = vmatprep.subr.mxu0 0.0
    %v1103 = vand.u32 %v169, 4294901760
    %1104 = vmatpush1.msra.mxu0 %v1103
    %1105 = vmatprep.subr.mxu0 0.0
    %v1106 = vand.u32 %v170, 4294901760
    %1107 = vmatpush1.msra.mxu0 %v1106
    %1108 = vmatprep.subr.mxu0 0.0
    %v1109 = vand.u32 %v171, 4294901760
    %1110 = vmatpush1.msra.mxu0 %v1109
    %1111 = vmatprep.subr.mxu0 0.0
    %v1112 = vand.u32 %v172, 4294901760
    %1113 = vmatpush1.msra.mxu0 %v1112
    %1114 = vmatprep.subr.mxu0 0.0
    %v1115 = vand.u32 %v173, 4294901760
    %1116 = vmatpush1.msra.mxu0 %v1115
    %1117 = vmatprep.subr.mxu0 0.0
    %v1118 = vand.u32 %v174, 4294901760
    %1119 = vmatpush1.msra.mxu0 %v1118
    %1120 = vmatprep.subr.mxu0 0.0
    %v1121 = vand.u32 %v175, 4294901760
    %1122 = vmatpush1.msra.mxu0 %v1121
    %1123 = vmatprep.subr.mxu0 0.0
    %v1124 = vand.u32 %v176, 4294901760
    %1125 = vmatpush1.msra.mxu0 %v1124
    %1126 = vmatprep.subr.mxu0 0.0
    %v1127 = vand.u32 %v177, 4294901760
    %1128 = vmatpush1.msra.mxu0 %v1127
    %1129 = vmatprep.subr.mxu0 0.0
    %v1130 = vand.u32 %v178, 4294901760
    %1131 = vmatpush1.msra.mxu0 %v1130
    %1132 = vmatprep.subr.mxu0 0.0
    %v1133 = vand.u32 %v179, 4294901760
    %1134 = vmatpush1.msra.mxu0 %v1133
    %1135 = vmatprep.subr.mxu0 0.0
    %v1136 = vand.u32 %v180, 4294901760
    %1137 = vmatpush1.msra.mxu0 %v1136
    %1138 = vmatprep.subr.mxu0 0.0
    %v1139 = vand.u32 %v181, 4294901760
    %1140 = vmatpush1.msra.mxu0 %v1139
    %1141 = vmatprep.subr.mxu0 0.0
    %v1142 = vand.u32 %v182, 4294901760
    %1143 = vmatpush1.msra.mxu0 %v1142
    %1144 = vmatprep.subr.mxu0 0.0
    %v1145 = vand.u32 %v183, 4294901760
    %1146 = vmatpush1.msra.mxu0 %v1145
    %v1147 = vsub.f32 %v121, %v121
    %v1148 = vand.u32 %v1147, 4294901760
    %1149 = vmatprep.mubr.f32.mxu0 %v1148
    %v1150 = vsub.f32 %v120, %v120
    %v1151 = vand.u32 %v1150, 4294901760
    %1152 = vmatmul.mubr.f32.gmra.mrb[0].mxu0 %v1151
    %v1153 = vpop.f32.mrb[0].mxu0
    %v1154 = vadd.f32 %v943, %v1153
    %v1155 = vpop.f32.mrb[0].mxu0
    %v1156 = vsub.f32 %v123, %v123
    %v1157 = vand.u32 %v1156, 4294901760
    %1158 = vmatprep.mubr.f32.mxu0 %v1157
    %v1159 = vsub.f32 %v122, %v122
    %v1160 = vand.u32 %v1159, 4294901760
    %1161 = vmatmul.mubr.f32.gmra.mrb[0].mxu0 %v1160
    %v1162 = vpop.f32.mrb[0].mxu0
    %v1163 = vadd.f32 %v950, %v1162
    %v1164 = vpop.f32.mrb[0].mxu0
    %v1165 = vsub.f32 %v125, %v125
    %v1166 = vand.u32 %v1165, 4294901760
    %1167 = vmatprep.mubr.f32.mxu0 %v1166
    %v1168 = vsub.f32 %v124, %v124
    %v1169 = vand.u32 %v1168, 4294901760
    %1170 = vmatmul.mubr.f32.gmra.mrb[0].mxu0 %v1169
    %v1171 = vpop.f32.mrb[0].mxu0
    %v1172 = vadd.f32 %v957, %v1171
    %v1173 = vpop.f32.mrb[0].mxu0
    %v1174 = vsub.f32 %v127, %v127
    %v1175 = vand.u32 %v1174, 4294901760
    %1176 = vmatprep.mubr.f32.mxu0 %v1175
    %v1177 = vsub.f32 %v126, %v126
    %v1178 = vand.u32 %v1177, 4294901760
    %1179 = vmatmul.mubr.f32.gmra.mrb[0].mxu0 %v1178
    %v1180 = vpop.f32.mrb[0].mxu0
    %v1181 = vadd.f32 %v964, %v1180
    %v1182 = vpop.f32.mrb[0].mxu0
    %v1183 = vsub.f32 %v129, %v129
    %v1184 = vand.u32 %v1183, 4294901760
    %1185 = vmatprep.mubr.f32.mxu0 %v1184
    %v1186 = vsub.f32 %v128, %v128
    %v1187 = vand.u32 %v1186, 4294901760
    %1188 = vmatmul.mubr.f32.gmra.mrb[0].mxu0 %v1187
    %v1189 = vpop.f32.mrb[0].mxu0
    %v1190 = vadd.f32 %v971, %v1189
    %v1191 = vpop.f32.mrb[0].mxu0
    %v1192 = vsub.f32 %v131, %v131
    %v1193 = vand.u32 %v1192, 4294901760
    %1194 = vmatprep.mubr.f32.mxu0 %v1193
    %v1195 = vsub.f32 %v130, %v130
    %v1196 = vand.u32 %v1195, 4294901760
    %1197 = vmatmul.mubr.f32.gmra.mrb[0].mxu0 %v1196
    %v1198 = vpop.f32.mrb[0].mxu0
    %v1199 = vadd.f32 %v978, %v1198
    %v1200 = vpop.f32.mrb[0].mxu0
    %v1201 = vsub.f32 %v133, %v133
    %v1202 = vand.u32 %v1201, 4294901760
    %1203 = vmatprep.mubr.f32.mxu0 %v1202
    %v1204 = vsub.f32 %v132, %v132
    %v1205 = vand.u32 %v1204, 4294901760
    %1206 = vmatmul.mubr.f32.gmra.mrb[0].mxu0 %v1205
    %v1207 = vpop.f32.mrb[0].mxu0
    %v1208 = vadd.f32 %v985, %v1207
    %v1209 = vpop.f32.mrb[0].mxu0
    %v1210 = vsub.f32 %v135, %v135
    %v1211 = vand.u32 %v1210, 4294901760
    %1212 = vmatprep.mubr.f32.mxu0 %v1211
    %v1213 = vsub.f32 %v134, %v134
    %v1214 = vand.u32 %v1213, 4294901760
    %1215 = vmatmul.mubr.f32.gmra.mrb[0].mxu0 %v1214
    %v1216 = vpop.f32.mrb[0].mxu0
    %v1217 = vadd.f32 %v992, %v1216
    %v1218 = vpop.f32.mrb[0].mxu0
    %v1219 = vsub.f32 %v137, %v137
    %v1220 = vand.u32 %v1219, 4294901760
    %1221 = vmatprep.mubr.f32.mxu0 %v1220
    %v1222 = vsub.f32 %v136, %v136
    %v1223 = vand.u32 %v1222, 4294901760
    %1224 = vmatmul.mubr.f32.gmra.mrb[0].mxu0 %v1223
    %v1225 = vpop.f32.mrb[0].mxu0
    %v1226 = vadd.f32 %v999, %v1225
    %v1227 = vpop.f32.mrb[0].mxu0
    %v1228 = vsub.f32 %v139, %v139
    %v1229 = vand.u32 %v1228, 4294901760
    %1230 = vmatprep.mubr.f32.mxu0 %v1229
    %v1231 = vsub.f32 %v138, %v138
    %v1232 = vand.u32 %v1231, 4294901760
    %1233 = vmatmul.mubr.f32.gmra.mrb[0].mxu0 %v1232
    %v1234 = vpop.f32.mrb[0].mxu0
    %v1235 = vadd.f32 %v1006, %v1234
    %v1236 = vpop.f32.mrb[0].mxu0
    %v1237 = vsub.f32 %v141, %v141
    %v1238 = vand.u32 %v1237, 4294901760
    %1239 = vmatprep.mubr.f32.mxu0 %v1238
    %v1240 = vsub.f32 %v140, %v140
    %v1241 = vand.u32 %v1240, 4294901760
    %1242 = vmatmul.mubr.f32.gmra.mrb[0].mxu0 %v1241
    %v1243 = vpop.f32.mrb[0].mxu0
    %v1244 = vadd.f32 %v1013, %v1243
    %v1245 = vpop.f32.mrb[0].mxu0
    %v1246 = vsub.f32 %v143, %v143
    %v1247 = vand.u32 %v1246, 4294901760
    %1248 = vmatprep.mubr.f32.mxu0 %v1247
    %v1249 = vsub.f32 %v142, %v142
    %v1250 = vand.u32 %v1249, 4294901760
    %1251 = vmatmul.mubr.f32.gmra.mrb[0].mxu0 %v1250
    %v1252 = vpop.f32.mrb[0].mxu0
    %v1253 = vadd.f32 %v1020, %v1252
    %v1254 = vpop.f32.mrb[0].mxu0
    %v1255 = vsub.f32 %v145, %v145
    %v1256 = vand.u32 %v1255, 4294901760
    %1257 = vmatprep.mubr.f32.mxu0 %v1256
    %v1258 = vsub.f32 %v144, %v144
    %v1259 = vand.u32 %v1258, 4294901760
    %1260 = vmatmul.mubr.f32.gmra.mrb[0].mxu0 %v1259
    %v1261 = vpop.f32.mrb[0].mxu0
    %v1262 = vadd.f32 %v1027, %v1261
    %v1263 = vpop.f32.mrb[0].mxu0
    %v1264 = vsub.f32 %v147, %v147
    %v1265 = vand.u32 %v1264, 4294901760
    %1266 = vmatprep.mubr.f32.mxu0 %v1265
    %v1267 = vsub.f32 %v146, %v146
    %v1268 = vand.u32 %v1267, 4294901760
    %1269 = vmatmul.mubr.f32.gmra.mrb[0].mxu0 %v1268
    %v1270 = vpop.f32.mrb[0].mxu0
    %v1271 = vadd.f32 %v1034, %v1270
    %v1272 = vpop.f32.mrb[0].mxu0
    %v1273 = vsub.f32 %v149, %v149
    %v1274 = vand.u32 %v1273, 4294901760
    %1275 = vmatprep.mubr.f32.mxu0 %v1274
    %v1276 = vsub.f32 %v148, %v148
    %v1277 = vand.u32 %v1276, 4294901760
    %1278 = vmatmul.mubr.f32.gmra.mrb[0].mxu0 %v1277
    %v1279 = vpop.f32.mrb[0].mxu0
    %v1280 = vadd.f32 %v1041, %v1279
    %v1281 = vpop.f32.mrb[0].mxu0
    %v1282 = vsub.f32 %v151, %v151
    %v1283 = vand.u32 %v1282, 4294901760
    %1284 = vmatprep.mubr.f32.mxu0 %v1283
    %v1285 = vsub.f32 %v150, %v150
    %v1286 = vand.u32 %v1285, 4294901760
    %1287 = vmatmul.mubr.f32.gmra.mrb[0].mxu0 %v1286
    %v1288 = vpop.f32.mrb[0].mxu0
    %v1289 = vadd.f32 %v1048, %v1288
    %v1290 = vpop.f32.mrb[0].mxu0
    %1291 = vdwg.mxu0
    %1292 = vmatprep.subr.mxu0 0.0
    %v1293 = vand.u32 %v152, 4294901760
    %v1294 = vsub.f32 %v152, %v1293
    %v1295 = vand.u32 %v1294, 4294901760
    %1296 = vmatpush1.msra.mxu0 %v1295
    %1297 = vmatprep.subr.mxu0 0.0
    %v1298 = vand.u32 %v153, 4294901760
    %v1299 = vsub.f32 %v153, %v1298
    %v1300 = vand.u32 %v1299, 4294901760
    %1301 = vmatpush1.msra.mxu0 %v1300
    %1302 = vmatprep.subr.mxu0 0.0
    %v1303 = vand.u32 %v154, 4294901760
    %v1304 = vsub.f32 %v154, %v1303
    %v1305 = vand.u32 %v1304, 4294901760
    %1306 = vmatpush1.msra.mxu0 %v1305
    %1307 = vmatprep.subr.mxu0 0.0
    %v1308 = vand.u32 %v155, 4294901760
    %v1309 = vsub.f32 %v155, %v1308
    %v1310 = vand.u32 %v1309, 4294901760
    %1311 = vmatpush1.msra.mxu0 %v1310
    %1312 = vmatprep.subr.mxu0 0.0
    %v1313 = vand.u32 %v156, 4294901760
    %v1314 = vsub.f32 %v156, %v1313
    %v1315 = vand.u32 %v1314, 4294901760
    %1316 = vmatpush1.msra.mxu0 %v1315
    %1317 = vmatprep.subr.mxu0 0.0
    %v1318 = vand.u32 %v157, 4294901760
    %v1319 = vsub.f32 %v157, %v1318
    %v1320 = vand.u32 %v1319, 4294901760
    %1321 = vmatpush1.msra.mxu0 %v1320
    %1322 = vmatprep.subr.mxu0 0.0
    %v1323 = vand.u32 %v158, 4294901760
    %v1324 = vsub.f32 %v158, %v1323
    %v1325 = vand.u32 %v1324, 4294901760
    %1326 = vmatpush1.msra.mxu0 %v1325
    %1327 = vmatprep.subr.mxu0 0.0
    %v1328 = vand.u32 %v159, 4294901760
    %v1329 = vsub.f32 %v159, %v1328
    %v1330 = vand.u32 %v1329, 4294901760
    %1331 = vmatpush1.msra.mxu0 %v1330
    %1332 = vmatprep.subr.mxu0 0.0
    %v1333 = vand.u32 %v160, 4294901760
    %v1334 = vsub.f32 %v160, %v1333
    %v1335 = vand.u32 %v1334, 4294901760
    %1336 = vmatpush1.msra.mxu0 %v1335
    %1337 = vmatprep.subr.mxu0 0.0
    %v1338 = vand.u32 %v161, 4294901760
    %v1339 = vsub.f32 %v161, %v1338
    %v1340 = vand.u32 %v1339, 4294901760
    %1341 = vmatpush1.msra.mxu0 %v1340
    %1342 = vmatprep.subr.mxu0 0.0
    %v1343 = vand.u32 %v162, 4294901760
    %v1344 = vsub.f32 %v162, %v1343
    %v1345 = vand.u32 %v1344, 4294901760
    %1346 = vmatpush1.msra.mxu0 %v1345
    %1347 = vmatprep.subr.mxu0 0.0
    %v1348 = vand.u32 %v163, 4294901760
    %v1349 = vsub.f32 %v163, %v1348
    %v1350 = vand.u32 %v1349, 4294901760
    %1351 = vmatpush1.msra.mxu0 %v1350
    %1352 = vmatprep.subr.mxu0 0.0
    %v1353 = vand.u32 %v164, 4294901760
    %v1354 = vsub.f32 %v164, %v1353
    %v1355 = vand.u32 %v1354, 4294901760
    %1356 = vmatpush1.msra.mxu0 %v1355
    %1357 = vmatprep.subr.mxu0 0.0
    %v1358 = vand.u32 %v165, 4294901760
    %v1359 = vsub.f32 %v165, %v1358
    %v1360 = vand.u32 %v1359, 4294901760
    %1361 = vmatpush1.msra.mxu0 %v1360
    %1362 = vmatprep.subr.mxu0 0.0
    %v1363 = vand.u32 %v166, 4294901760
    %v1364 = vsub.f32 %v166, %v1363
    %v1365 = vand.u32 %v1364, 4294901760
    %1366 = vmatpush1.msra.mxu0 %v1365
    %1367 = vmatprep.subr.mxu0 0.0
    %v1368 = vand.u32 %v167, 4294901760
    %v1369 = vsub.f32 %v167, %v1368
    %v1370 = vand.u32 %v1369, 4294901760
    %1371 = vmatpush1.msra.mxu0 %v1370
    %1372 = vmatprep.subr.mxu0 0.0
    %v1373 = vand.u32 %v168, 4294901760
    %v1374 = vsub.f32 %v168, %v1373
    %v1375 = vand.u32 %v1374, 4294901760
    %1376 = vmatpush1.msra.mxu0 %v1375
    %1377 = vmatprep.subr.mxu0 0.0
    %v1378 = vand.u32 %v169, 4294901760
    %v1379 = vsub.f32 %v169, %v1378
    %v1380 = vand.u32 %v1379, 4294901760
    %1381 = vmatpush1.msra.mxu0 %v1380
    %1382 = vmatprep.subr.mxu0 0.0
    %v1383 = vand.u32 %v170, 4294901760
    %v1384 = vsub.f32 %v170, %v1383
    %v1385 = vand.u32 %v1384, 4294901760
    %1386 = vmatpush1.msra.mxu0 %v1385
    %1387 = vmatprep.subr.mxu0 0.0
    %v1388 = vand.u32 %v171, 4294901760
    %v1389 = vsub.f32 %v171, %v1388
    %v1390 = vand.u32 %v1389, 4294901760
    %1391 = vmatpush1.msra.mxu0 %v1390
    %1392 = vmatprep.subr.mxu0 0.0
    %v1393 = vand.u32 %v172, 4294901760
    %v1394 = vsub.f32 %v172, %v1393
    %v1395 = vand.u32 %v1394, 4294901760
    %1396 = vmatpush1.msra.mxu0 %v1395
    %1397 = vmatprep.subr.mxu0 0.0
    %v1398 = vand.u32 %v173, 4294901760
    %v1399 = vsub.f32 %v173, %v1398
    %v1400 = vand.u32 %v1399, 4294901760
    %1401 = vmatpush1.msra.mxu0 %v1400
    %1402 = vmatprep.subr.mxu0 0.0
    %v1403 = vand.u32 %v174, 4294901760
    %v1404 = vsub.f32 %v174, %v1403
    %v1405 = vand.u32 %v1404, 4294901760
    %1406 = vmatpush1.msra.mxu0 %v1405
    %1407 = vmatprep.subr.mxu0 0.0
    %v1408 = vand.u32 %v175, 4294901760
    %v1409 = vsub.f32 %v175, %v1408
    %v1410 = vand.u32 %v1409, 4294901760
    %1411 = vmatpush1.msra.mxu0 %v1410
    %1412 = vmatprep.subr.mxu0 0.0
    %v1413 = vand.u32 %v176, 4294901760
    %v1414 = vsub.f32 %v176, %v1413
    %v1415 = vand.u32 %v1414, 4294901760
    %1416 = vmatpush1.msra.mxu0 %v1415
    %1417 = vmatprep.subr.mxu0 0.0
    %v1418 = vand.u32 %v177, 4294901760
    %v1419 = vsub.f32 %v177, %v1418
    %v1420 = vand.u32 %v1419, 4294901760
    %1421 = vmatpush1.msra.mxu0 %v1420
    %1422 = vmatprep.subr.mxu0 0.0
    %v1423 = vand.u32 %v178, 4294901760
    %v1424 = vsub.f32 %v178, %v1423
    %v1425 = vand.u32 %v1424, 4294901760
    %1426 = vmatpush1.msra.mxu0 %v1425
    %1427 = vmatprep.subr.mxu0 0.0
    %v1428 = vand.u32 %v179, 4294901760
    %v1429 = vsub.f32 %v179, %v1428
    %v1430 = vand.u32 %v1429, 4294901760
    %1431 = vmatpush1.msra.mxu0 %v1430
    %1432 = vmatprep.subr.mxu0 0.0
    %v1433 = vand.u32 %v180, 4294901760
    %v1434 = vsub.f32 %v180, %v1433
    %v1435 = vand.u32 %v1434, 4294901760
    %1436 = vmatpush1.msra.mxu0 %v1435
    %1437 = vmatprep.subr.mxu0 0.0
    %v1438 = vand.u32 %v181, 4294901760
    %v1439 = vsub.f32 %v181, %v1438
    %v1440 = vand.u32 %v1439, 4294901760
    %1441 = vmatpush1.msra.mxu0 %v1440
    %1442 = vmatprep.subr.mxu0 0.0
    %v1443 = vand.u32 %v182, 4294901760
    %v1444 = vsub.f32 %v182, %v1443
    %v1445 = vand.u32 %v1444, 4294901760
    %1446 = vmatpush1.msra.mxu0 %v1445
    %1447 = vmatprep.subr.mxu0 0.0
    %v1448 = vand.u32 %v183, 4294901760
    %v1449 = vsub.f32 %v183, %v1448
    %v1450 = vand.u32 %v1449, 4294901760
    %1451 = vmatpush1.msra.mxu0 %v1450
    %1452 = vmatprep.mubr.f32.mxu0 %v121
    %1453 = vmatmul.mubr.f32.gmra.mrb[0].mxu0 %v120
    %v1454 = vpop.f32.mrb[0].mxu0
    %v1455 = vadd.f32 %v1154, %v1454
    %v1456 = vpop.f32.mrb[0].mxu0
    %1457 = vmatprep.mubr.f32.mxu0 %v123
    %1458 = vmatmul.mubr.f32.gmra.mrb[0].mxu0 %v122
    %v1459 = vpop.f32.mrb[0].mxu0
    %v1460 = vadd.f32 %v1163, %v1459
    %v1461 = vpop.f32.mrb[0].mxu0
    %1462 = vmatprep.mubr.f32.mxu0 %v125
    %1463 = vmatmul.mubr.f32.gmra.mrb[0].mxu0 %v124
    %v1464 = vpop.f32.mrb[0].mxu0
    %v1465 = vadd.f32 %v1172, %v1464
    %v1466 = vpop.f32.mrb[0].mxu0
    %1467 = vmatprep.mubr.f32.mxu0 %v127
    %1468 = vmatmul.mubr.f32.gmra.mrb[0].mxu0 %v126
    %v1469 = vpop.f32.mrb[0].mxu0
    %v1470 = vadd.f32 %v1181, %v1469
    %v1471 = vpop.f32.mrb[0].mxu0
    %1472 = vmatprep.mubr.f32.mxu0 %v129
    %1473 = vmatmul.mubr.f32.gmra.mrb[0].mxu0 %v128
    %v1474 = vpop.f32.mrb[0].mxu0
    %v1475 = vadd.f32 %v1190, %v1474
    %v1476 = vpop.f32.mrb[0].mxu0
    %1477 = vmatprep.mubr.f32.mxu0 %v131
    %1478 = vmatmul.mubr.f32.gmra.mrb[0].mxu0 %v130
    %v1479 = vpop.f32.mrb[0].mxu0
    %v1480 = vadd.f32 %v1199, %v1479
    %v1481 = vpop.f32.mrb[0].mxu0
    %1482 = vmatprep.mubr.f32.mxu0 %v133
    %1483 = vmatmul.mubr.f32.gmra.mrb[0].mxu0 %v132
    %v1484 = vpop.f32.mrb[0].mxu0
    %v1485 = vadd.f32 %v1208, %v1484
    %v1486 = vpop.f32.mrb[0].mxu0
    %1487 = vmatprep.mubr.f32.mxu0 %v135
    %1488 = vmatmul.mubr.f32.gmra.mrb[0].mxu0 %v134
    %v1489 = vpop.f32.mrb[0].mxu0
    %v1490 = vadd.f32 %v1217, %v1489
    %v1491 = vpop.f32.mrb[0].mxu0
    %1492 = vmatprep.mubr.f32.mxu0 %v137
    %1493 = vmatmul.mubr.f32.gmra.mrb[0].mxu0 %v136
    %v1494 = vpop.f32.mrb[0].mxu0
    %v1495 = vadd.f32 %v1226, %v1494
    %v1496 = vpop.f32.mrb[0].mxu0
    %1497 = vmatprep.mubr.f32.mxu0 %v139
    %1498 = vmatmul.mubr.f32.gmra.mrb[0].mxu0 %v138
    %v1499 = vpop.f32.mrb[0].mxu0
    %v1500 = vadd.f32 %v1235, %v1499
    %v1501 = vpop.f32.mrb[0].mxu0
    %1502 = vmatprep.mubr.f32.mxu0 %v141
    %1503 = vmatmul.mubr.f32.gmra.mrb[0].mxu0 %v140
    %v1504 = vpop.f32.mrb[0].mxu0
    %v1505 = vadd.f32 %v1244, %v1504
    %v1506 = vpop.f32.mrb[0].mxu0
    %1507 = vmatprep.mubr.f32.mxu0 %v143
    %1508 = vmatmul.mubr.f32.gmra.mrb[0].mxu0 %v142
    %v1509 = vpop.f32.mrb[0].mxu0
    %v1510 = vadd.f32 %v1253, %v1509
    %v1511 = vpop.f32.mrb[0].mxu0
    %1512 = vmatprep.mubr.f32.mxu0 %v145
    %1513 = vmatmul.mubr.f32.gmra.mrb[0].mxu0 %v144
    %v1514 = vpop.f32.mrb[0].mxu0
    %v1515 = vadd.f32 %v1262, %v1514
    %v1516 = vpop.f32.mrb[0].mxu0
    %1517 = vmatprep.mubr.f32.mxu0 %v147
    %1518 = vmatmul.mubr.f32.gmra.mrb[0].mxu0 %v146
    %v1519 = vpop.f32.mrb[0].mxu0
    %v1520 = vadd.f32 %v1271, %v1519
    %v1521 = vpop.f32.mrb[0].mxu0
    %1522 = vmatprep.mubr.f32.mxu0 %v149
    %1523 = vmatmul.mubr.f32.gmra.mrb[0].mxu0 %v148
    %v1524 = vpop.f32.mrb[0].mxu0
    %v1525 = vadd.f32 %v1280, %v1524
    %v1526 = vpop.f32.mrb[0].mxu0
    %1527 = vmatprep.mubr.f32.mxu0 %v151
    %1528 = vmatmul.mubr.f32.gmra.mrb[0].mxu0 %v150
    %v1529 = vpop.f32.mrb[0].mxu0
    %v1530 = vadd.f32 %v1289, %v1529
    %v1531 = vpop.f32.mrb[0].mxu0
    %1532 = vdwg.mxu0
    %1533 = vmatprep.subr.mxu0 0.0
    %v1534 = vand.u32 %v152, 4294901760
    %1535 = vmatpush1.msra.mxu0 %v1534
    %1536 = vmatprep.subr.mxu0 0.0
    %v1537 = vand.u32 %v153, 4294901760
    %1538 = vmatpush1.msra.mxu0 %v1537
    %1539 = vmatprep.subr.mxu0 0.0
    %v1540 = vand.u32 %v154, 4294901760
    %1541 = vmatpush1.msra.mxu0 %v1540
    %1542 = vmatprep.subr.mxu0 0.0
    %v1543 = vand.u32 %v155, 4294901760
    %1544 = vmatpush1.msra.mxu0 %v1543
    %1545 = vmatprep.subr.mxu0 0.0
    %v1546 = vand.u32 %v156, 4294901760
    %1547 = vmatpush1.msra.mxu0 %v1546
    %1548 = vmatprep.subr.mxu0 0.0
    %v1549 = vand.u32 %v157, 4294901760
    %1550 = vmatpush1.msra.mxu0 %v1549
    %1551 = vmatprep.subr.mxu0 0.0
    %v1552 = vand.u32 %v158, 4294901760
    %1553 = vmatpush1.msra.mxu0 %v1552
    %1554 = vmatprep.subr.mxu0 0.0
    %v1555 = vand.u32 %v159, 4294901760
    %1556 = vmatpush1.msra.mxu0 %v1555
    %1557 = vmatprep.subr.mxu0 0.0
    %v1558 = vand.u32 %v160, 4294901760
    %1559 = vmatpush1.msra.mxu0 %v1558
    %1560 = vmatprep.subr.mxu0 0.0
    %v1561 = vand.u32 %v161, 4294901760
    %1562 = vmatpush1.msra.mxu0 %v1561
    %1563 = vmatprep.subr.mxu0 0.0
    %v1564 = vand.u32 %v162, 4294901760
    %1565 = vmatpush1.msra.mxu0 %v1564
    %1566 = vmatprep.subr.mxu0 0.0
    %v1567 = vand.u32 %v163, 4294901760
    %1568 = vmatpush1.msra.mxu0 %v1567
    %1569 = vmatprep.subr.mxu0 0.0
    %v1570 = vand.u32 %v164, 4294901760
    %1571 = vmatpush1.msra.mxu0 %v1570
    %1572 = vmatprep.subr.mxu0 0.0
    %v1573 = vand.u32 %v165, 4294901760
    %1574 = vmatpush1.msra.mxu0 %v1573
    %1575 = vmatprep.subr.mxu0 0.0
    %v1576 = vand.u32 %v166, 4294901760
    %1577 = vmatpush1.msra.mxu0 %v1576
    %1578 = vmatprep.subr.mxu0 0.0
    %v1579 = vand.u32 %v167, 4294901760
    %1580 = vmatpush1.msra.mxu0 %v1579
    %1581 = vmatprep.subr.mxu0 0.0
    %v1582 = vand.u32 %v168, 4294901760
    %1583 = vmatpush1.msra.mxu0 %v1582
    %1584 = vmatprep.subr.mxu0 0.0
    %v1585 = vand.u32 %v169, 4294901760
    %1586 = vmatpush1.msra.mxu0 %v1585
    %1587 = vmatprep.subr.mxu0 0.0
    %v1588 = vand.u32 %v170, 4294901760
    %1589 = vmatpush1.msra.mxu0 %v1588
    %1590 = vmatprep.subr.mxu0 0.0
    %v1591 = vand.u32 %v171, 4294901760
    %1592 = vmatpush1.msra.mxu0 %v1591
    %1593 = vmatprep.subr.mxu0 0.0
    %v1594 = vand.u32 %v172, 4294901760
    %1595 = vmatpush1.msra.mxu0 %v1594
    %1596 = vmatprep.subr.mxu0 0.0
    %v1597 = vand.u32 %v173, 4294901760
    %1598 = vmatpush1.msra.mxu0 %v1597
    %1599 = vmatprep.subr.mxu0 0.0
    %v1600 = vand.u32 %v174, 4294901760
    %1601 = vmatpush1.msra.mxu0 %v1600
    %1602 = vmatprep.subr.mxu0 0.0
    %v1603 = vand.u32 %v175, 4294901760
    %1604 = vmatpush1.msra.mxu0 %v1603
    %1605 = vmatprep.subr.mxu0 0.0
    %v1606 = vand.u32 %v176, 4294901760
    %1607 = vmatpush1.msra.mxu0 %v1606
    %1608 = vmatprep.subr.mxu0 0.0
    %v1609 = vand.u32 %v177, 4294901760
    %1610 = vmatpush1.msra.mxu0 %v1609
    %1611 = vmatprep.subr.mxu0 0.0
    %v1612 = vand.u32 %v178, 4294901760
    %1613 = vmatpush1.msra.mxu0 %v1612
    %1614 = vmatprep.subr.mxu0 0.0
    %v1615 = vand.u32 %v179, 4294901760
    %1616 = vmatpush1.msra.mxu0 %v1615
    %1617 = vmatprep.subr.mxu0 0.0
    %v1618 = vand.u32 %v180, 4294901760
    %1619 = vmatpush1.msra.mxu0 %v1618
    %1620 = vmatprep.subr.mxu0 0.0
    %v1621 = vand.u32 %v181, 4294901760
    %1622 = vmatpush1.msra.mxu0 %v1621
    %1623 = vmatprep.subr.mxu0 0.0
    %v1624 = vand.u32 %v182, 4294901760
    %1625 = vmatpush1.msra.mxu0 %v1624
    %1626 = vmatprep.subr.mxu0 0.0
    %v1627 = vand.u32 %v183, 4294901760
    %1628 = vmatpush1.msra.mxu0 %v1627
    %1629 = vmatprep.mubr.f32.mxu0 %v121
    %1630 = vmatmul.mubr.f32.gmra.mrb[0].mxu0 %v120
    %v1631 = vpop.f32.mrb[0].mxu0
    %v1632 = vadd.f32 %v1455, %v1631
    %v1633 = vpop.f32.mrb[0].mxu0
    %1634 = vmatprep.mubr.f32.mxu0 %v123
    %1635 = vmatmul.mubr.f32.gmra.mrb[0].mxu0 %v122
    %v1636 = vpop.f32.mrb[0].mxu0
    %v1637 = vadd.f32 %v1460, %v1636
    %v1638 = vpop.f32.mrb[0].mxu0
    %1639 = vmatprep.mubr.f32.mxu0 %v125
    %1640 = vmatmul.mubr.f32.gmra.mrb[0].mxu0 %v124
    %v1641 = vpop.f32.mrb[0].mxu0
    %v1642 = vadd.f32 %v1465, %v1641
    %v1643 = vpop.f32.mrb[0].mxu0
    %1644 = vmatprep.mubr.f32.mxu0 %v127
    %1645 = vmatmul.mubr.f32.gmra.mrb[0].mxu0 %v126
    %v1646 = vpop.f32.mrb[0].mxu0
    %v1647 = vadd.f32 %v1470, %v1646
    %v1648 = vpop.f32.mrb[0].mxu0
    %1649 = vmatprep.mubr.f32.mxu0 %v129
    %1650 = vmatmul.mubr.f32.gmra.mrb[0].mxu0 %v128
    %v1651 = vpop.f32.mrb[0].mxu0
    %v1652 = vadd.f32 %v1475, %v1651
    %v1653 = vpop.f32.mrb[0].mxu0
    %1654 = vmatprep.mubr.f32.mxu0 %v131
    %1655 = vmatmul.mubr.f32.gmra.mrb[0].mxu0 %v130
    %v1656 = vpop.f32.mrb[0].mxu0
    %v1657 = vadd.f32 %v1480, %v1656
    %v1658 = vpop.f32.mrb[0].mxu0
    %1659 = vmatprep.mubr.f32.mxu0 %v133
    %1660 = vmatmul.mubr.f32.gmra.mrb[0].mxu0 %v132
    %v1661 = vpop.f32.mrb[0].mxu0
    %v1662 = vadd.f32 %v1485, %v1661
    %v1663 = vpop.f32.mrb[0].mxu0
    %1664 = vmatprep.mubr.f32.mxu0 %v135
    %1665 = vmatmul.mubr.f32.gmra.mrb[0].mxu0 %v134
    %v1666 = vpop.f32.mrb[0].mxu0
    %v1667 = vadd.f32 %v1490, %v1666
    %v1668 = vpop.f32.mrb[0].mxu0
    %1669 = vmatprep.mubr.f32.mxu0 %v137
    %1670 = vmatmul.mubr.f32.gmra.mrb[0].mxu0 %v136
    %v1671 = vpop.f32.mrb[0].mxu0
    %v1672 = vadd.f32 %v1495, %v1671
    %v1673 = vpop.f32.mrb[0].mxu0
    %1674 = vmatprep.mubr.f32.mxu0 %v139
    %1675 = vmatmul.mubr.f32.gmra.mrb[0].mxu0 %v138
    %v1676 = vpop.f32.mrb[0].mxu0
    %v1677 = vadd.f32 %v1500, %v1676
    %v1678 = vpop.f32.mrb[0].mxu0
    %1679 = vmatprep.mubr.f32.mxu0 %v141
    %1680 = vmatmul.mubr.f32.gmra.mrb[0].mxu0 %v140
    %v1681 = vpop.f32.mrb[0].mxu0
    %v1682 = vadd.f32 %v1505, %v1681
    %v1683 = vpop.f32.mrb[0].mxu0
    %1684 = vmatprep.mubr.f32.mxu0 %v143
    %1685 = vmatmul.mubr.f32.gmra.mrb[0].mxu0 %v142
    %v1686 = vpop.f32.mrb[0].mxu0
    %v1687 = vadd.f32 %v1510, %v1686
    %v1688 = vpop.f32.mrb[0].mxu0
    %1689 = vmatprep.mubr.f32.mxu0 %v145
    %1690 = vmatmul.mubr.f32.gmra.mrb[0].mxu0 %v144
    %v1691 = vpop.f32.mrb[0].mxu0
    %v1692 = vadd.f32 %v1515, %v1691
    %v1693 = vpop.f32.mrb[0].mxu0
    %1694 = vmatprep.mubr.f32.mxu0 %v147
    %1695 = vmatmul.mubr.f32.gmra.mrb[0].mxu0 %v146
    %v1696 = vpop.f32.mrb[0].mxu0
    %v1697 = vadd.f32 %v1520, %v1696
    %v1698 = vpop.f32.mrb[0].mxu0
    %1699 = vmatprep.mubr.f32.mxu0 %v149
    %1700 = vmatmul.mubr.f32.gmra.mrb[0].mxu0 %v148
    %v1701 = vpop.f32.mrb[0].mxu0
    %v1702 = vadd.f32 %v1525, %v1701
    %v1703 = vpop.f32.mrb[0].mxu0
    %1704 = vmatprep.mubr.f32.mxu0 %v151
    %1705 = vmatmul.mubr.f32.gmra.mrb[0].mxu0 %v150
    %v1706 = vpop.f32.mrb[0].mxu0
    %v1707 = vadd.f32 %v1530, %v1706
    %v1708 = vpop.f32.mrb[0].mxu0
    %1709 = vdwg.mxu0
    %v1710 = vld [vmem:[%s3] sm:$0x1]
    %v1711 = vld [vmem:[%s4] sm:$0x1]
    %1712 = vadd.xlane.f32.xlu0 %v1632
    %v1713 = vpop.xlane.xlu0 %1712
    %1714 = vadd.xlane.f32.xlu0 %v1637
    %v1715 = vpop.xlane.xlu0 %1714
    %1716 = vadd.xlane.f32.xlu0 %v1642
    %v1717 = vpop.xlane.xlu0 %1716
    %1718 = vadd.xlane.f32.xlu0 %v1647
    %v1719 = vpop.xlane.xlu0 %1718
    %1720 = vadd.xlane.f32.xlu0 %v1652
    %v1721 = vpop.xlane.xlu0 %1720
    %1722 = vadd.xlane.f32.xlu0 %v1657
    %v1723 = vpop.xlane.xlu0 %1722
    %1724 = vadd.xlane.f32.xlu0 %v1662
    %v1725 = vpop.xlane.xlu0 %1724
    %1726 = vadd.xlane.f32.xlu0 %v1667
    %v1727 = vpop.xlane.xlu0 %1726
    %1728 = vadd.xlane.f32.xlu0 %v1672
    %v1729 = vpop.xlane.xlu0 %1728
    %1730 = vadd.xlane.f32.xlu0 %v1677
    %v1731 = vpop.xlane.xlu0 %1730
    %1732 = vadd.xlane.f32.xlu0 %v1682
    %v1733 = vpop.xlane.xlu0 %1732
    %1734 = vadd.xlane.f32.xlu0 %v1687
    %v1735 = vpop.xlane.xlu0 %1734
    %1736 = vadd.xlane.f32.xlu0 %v1692
    %v1737 = vpop.xlane.xlu0 %1736
    %1738 = vadd.xlane.f32.xlu0 %v1697
    %v1739 = vpop.xlane.xlu0 %1738
    %1740 = vadd.xlane.f32.xlu0 %v1702
    %v1741 = vpop.xlane.xlu0 %1740
    %1742 = vadd.xlane.f32.xlu0 %v1707
    %v1743 = vpop.xlane.xlu0 %1742
    %v1744 = vrcp.pop 128.0
    %v1745 = vmul.f32 %v1713, %v1744
    %v1746 = vmul.f32 %v1715, %v1744
    %v1747 = vmul.f32 %v1717, %v1744
    %v1748 = vmul.f32 %v1719, %v1744
    %v1749 = vmul.f32 %v1721, %v1744
    %v1750 = vmul.f32 %v1723, %v1744
    %v1751 = vmul.f32 %v1725, %v1744
    %v1752 = vmul.f32 %v1727, %v1744
    %v1753 = vmul.f32 %v1729, %v1744
    %v1754 = vmul.f32 %v1731, %v1744
    %v1755 = vmul.f32 %v1733, %v1744
    %v1756 = vmul.f32 %v1735, %v1744
    %v1757 = vmul.f32 %v1737, %v1744
    %v1758 = vmul.f32 %v1739, %v1744
    %v1759 = vmul.f32 %v1741, %v1744
    %v1760 = vmul.f32 %v1743, %v1744
    %v1761 = vsub.f32 %v1632, %v1745
    %v1762 = vsub.f32 %v1637, %v1746
    %v1763 = vsub.f32 %v1642, %v1747
    %v1764 = vsub.f32 %v1647, %v1748
    %v1765 = vsub.f32 %v1652, %v1749
    %v1766 = vsub.f32 %v1657, %v1750
    %v1767 = vsub.f32 %v1662, %v1751
    %v1768 = vsub.f32 %v1667, %v1752
    %v1769 = vsub.f32 %v1672, %v1753
    %v1770 = vsub.f32 %v1677, %v1754
    %v1771 = vsub.f32 %v1682, %v1755
    %v1772 = vsub.f32 %v1687, %v1756
    %v1773 = vsub.f32 %v1692, %v1757
    %v1774 = vsub.f32 %v1697, %v1758
    %v1775 = vsub.f32 %v1702, %v1759
    %v1776 = vsub.f32 %v1707, %v1760
    %v1777 = vmul.f32 %v1761, %v1761
    %v1778 = vmul.f32 %v1762, %v1762
    %v1779 = vmul.f32 %v1763, %v1763
    %v1780 = vmul.f32 %v1764, %v1764
    %v1781 = vmul.f32 %v1765, %v1765
    %v1782 = vmul.f32 %v1766, %v1766
    %v1783 = vmul.f32 %v1767, %v1767
    %v1784 = vmul.f32 %v1768, %v1768
    %v1785 = vmul.f32 %v1769, %v1769
    %v1786 = vmul.f32 %v1770, %v1770
    %v1787 = vmul.f32 %v1771, %v1771
    %v1788 = vmul.f32 %v1772, %v1772
    %v1789 = vmul.f32 %v1773, %v1773
    %v1790 = vmul.f32 %v1774, %v1774
    %v1791 = vmul.f32 %v1775, %v1775
    %v1792 = vmul.f32 %v1776, %v1776
    %1793 = vadd.xlane.f32.xlu0 %v1777
    %v1794 = vpop.xlane.xlu0 %1793
    %1795 = vadd.xlane.f32.xlu0 %v1778
    %v1796 = vpop.xlane.xlu0 %1795
    %1797 = vadd.xlane.f32.xlu0 %v1779
    %v1798 = vpop.xlane.xlu0 %1797
    %1799 = vadd.xlane.f32.xlu0 %v1780
    %v1800 = vpop.xlane.xlu0 %1799
    %1801 = vadd.xlane.f32.xlu0 %v1781
    %v1802 = vpop.xlane.xlu0 %1801
    %1803 = vadd.xlane.f32.xlu0 %v1782
    %v1804 = vpop.xlane.xlu0 %1803
    %1805 = vadd.xlane.f32.xlu0 %v1783
    %v1806 = vpop.xlane.xlu0 %1805
    %1807 = vadd.xlane.f32.xlu0 %v1784
    %v1808 = vpop.xlane.xlu0 %1807
    %1809 = vadd.xlane.f32.xlu0 %v1785
    %v1810 = vpop.xlane.xlu0 %1809
    %1811 = vadd.xlane.f32.xlu0 %v1786
    %v1812 = vpop.xlane.xlu0 %1811
    %1813 = vadd.xlane.f32.xlu0 %v1787
    %v1814 = vpop.xlane.xlu0 %1813
    %1815 = vadd.xlane.f32.xlu0 %v1788
    %v1816 = vpop.xlane.xlu0 %1815
    %1817 = vadd.xlane.f32.xlu0 %v1789
    %v1818 = vpop.xlane.xlu0 %1817
    %1819 = vadd.xlane.f32.xlu0 %v1790
    %v1820 = vpop.xlane.xlu0 %1819
    %1821 = vadd.xlane.f32.xlu0 %v1791
    %v1822 = vpop.xlane.xlu0 %1821
    %1823 = vadd.xlane.f32.xlu0 %v1792
    %v1824 = vpop.xlane.xlu0 %1823
    %v1825 = vmul.f32 %v1794, %v1744
    %v1826 = vmul.f32 %v1796, %v1744
    %v1827 = vmul.f32 %v1798, %v1744
    %v1828 = vmul.f32 %v1800, %v1744
    %v1829 = vmul.f32 %v1802, %v1744
    %v1830 = vmul.f32 %v1804, %v1744
    %v1831 = vmul.f32 %v1806, %v1744
    %v1832 = vmul.f32 %v1808, %v1744
    %v1833 = vmul.f32 %v1810, %v1744
    %v1834 = vmul.f32 %v1812, %v1744
    %v1835 = vmul.f32 %v1814, %v1744
    %v1836 = vmul.f32 %v1816, %v1744
    %v1837 = vmul.f32 %v1818, %v1744
    %v1838 = vmul.f32 %v1820, %v1744
    %v1839 = vmul.f32 %v1822, %v1744
    %v1840 = vmul.f32 %v1824, %v1744
    %v1841 = vadd.f32 %v1825, 1e-05
    %v1842 = vadd.f32 %v1826, 1e-05
    %v1843 = vadd.f32 %v1827, 1e-05
    %v1844 = vadd.f32 %v1828, 1e-05
    %v1845 = vadd.f32 %v1829, 1e-05
    %v1846 = vadd.f32 %v1830, 1e-05
    %v1847 = vadd.f32 %v1831, 1e-05
    %v1848 = vadd.f32 %v1832, 1e-05
    %v1849 = vadd.f32 %v1833, 1e-05
    %v1850 = vadd.f32 %v1834, 1e-05
    %v1851 = vadd.f32 %v1835, 1e-05
    %v1852 = vadd.f32 %v1836, 1e-05
    %v1853 = vadd.f32 %v1837, 1e-05
    %v1854 = vadd.f32 %v1838, 1e-05
    %v1855 = vadd.f32 %v1839, 1e-05
    %v1856 = vadd.f32 %v1840, 1e-05
    %v1857 = vrsqrt.pop %v1841
    %v1858 = vrsqrt.pop %v1842
    %v1859 = vrsqrt.pop %v1843
    %v1860 = vrsqrt.pop %v1844
    %v1861 = vrsqrt.pop %v1845
    %v1862 = vrsqrt.pop %v1846
    %v1863 = vrsqrt.pop %v1847
    %v1864 = vrsqrt.pop %v1848
    %v1865 = vrsqrt.pop %v1849
    %v1866 = vrsqrt.pop %v1850
    %v1867 = vrsqrt.pop %v1851
    %v1868 = vrsqrt.pop %v1852
    %v1869 = vrsqrt.pop %v1853
    %v1870 = vrsqrt.pop %v1854
    %v1871 = vrsqrt.pop %v1855
    %v1872 = vrsqrt.pop %v1856
    %v1873 = vmul.f32 %v1761, %v1857
    %v1874 = vmul.f32 %v1762, %v1858
    %v1875 = vmul.f32 %v1763, %v1859
    %v1876 = vmul.f32 %v1764, %v1860
    %v1877 = vmul.f32 %v1765, %v1861
    %v1878 = vmul.f32 %v1766, %v1862
    %v1879 = vmul.f32 %v1767, %v1863
    %v1880 = vmul.f32 %v1768, %v1864
    %v1881 = vmul.f32 %v1769, %v1865
    %v1882 = vmul.f32 %v1770, %v1866
    %v1883 = vmul.f32 %v1771, %v1867
    %v1884 = vmul.f32 %v1772, %v1868
    %v1885 = vmul.f32 %v1773, %v1869
    %v1886 = vmul.f32 %v1774, %v1870
    %v1887 = vmul.f32 %v1775, %v1871
    %v1888 = vmul.f32 %v1776, %v1872
    %v1890 = vlaneseq
    %v1891 = vshrl.u32 %v1890, 7
    %v1892 = vsub.s32 0, %v1891
    %v1893 = vrot.slane %v1710, %v1892
    %v1895 = vmul.f32 %v1873, %v1893
    %v1896 = vmul.f32 %v1874, %v1893
    %v1897 = vmul.f32 %v1875, %v1893
    %v1898 = vmul.f32 %v1876, %v1893
    %v1899 = vmul.f32 %v1877, %v1893
    %v1900 = vmul.f32 %v1878, %v1893
    %v1901 = vmul.f32 %v1879, %v1893
    %v1902 = vmul.f32 %v1880, %v1893
    %v1903 = vmul.f32 %v1881, %v1893
    %v1904 = vmul.f32 %v1882, %v1893
    %v1905 = vmul.f32 %v1883, %v1893
    %v1906 = vmul.f32 %v1884, %v1893
    %v1907 = vmul.f32 %v1885, %v1893
    %v1908 = vmul.f32 %v1886, %v1893
    %v1909 = vmul.f32 %v1887, %v1893
    %v1910 = vmul.f32 %v1888, %v1893
    %v1912 = vlaneseq
    %v1913 = vshrl.u32 %v1912, 7
    %v1914 = vsub.s32 0, %v1913
    %v1915 = vrot.slane %v1711, %v1914
    %v1917 = vadd.f32 %v1895, %v1915
    %v1918 = vadd.f32 %v1896, %v1915
    %v1919 = vadd.f32 %v1897, %v1915
    %v1920 = vadd.f32 %v1898, %v1915
    %v1921 = vadd.f32 %v1899, %v1915
    %v1922 = vadd.f32 %v1900, %v1915
    %v1923 = vadd.f32 %v1901, %v1915
    %v1924 = vadd.f32 %v1902, %v1915
    %v1925 = vadd.f32 %v1903, %v1915
    %v1926 = vadd.f32 %v1904, %v1915
    %v1927 = vadd.f32 %v1905, %v1915
    %v1928 = vadd.f32 %v1906, %v1915
    %v1929 = vadd.f32 %v1907, %v1915
    %v1930 = vadd.f32 %v1908, %v1915
    %v1931 = vadd.f32 %v1909, %v1915
    %v1932 = vadd.f32 %v1910, %v1915
    %1933 = vst [vmem:[#allocation2] sm:$0xff] %v1917
    %1934 = vst [vmem:[#allocation2 + $0x8] sm:$0xff] %v1918
    %1935 = vst [vmem:[#allocation2 + $0x10] sm:$0xff] %v1919
    %1936 = vst [vmem:[#allocation2 + $0x18] sm:$0xff] %v1920
    %1937 = vst [vmem:[#allocation2 + $0x20] sm:$0xff] %v1921
    %1938 = vst [vmem:[#allocation2 + $0x28] sm:$0xff] %v1922
    %1939 = vst [vmem:[#allocation2 + $0x30] sm:$0xff] %v1923
    %1940 = vst [vmem:[#allocation2 + $0x38] sm:$0xff] %v1924
    %1941 = vst [vmem:[#allocation2 + $0x40] sm:$0xff] %v1925
    %1942 = vst [vmem:[#allocation2 + $0x48] sm:$0xff] %v1926
    %1943 = vst [vmem:[#allocation2 + $0x50] sm:$0xff] %v1927
    %1944 = vst [vmem:[#allocation2 + $0x58] sm:$0xff] %v1928
    %1945 = vst [vmem:[#allocation2 + $0x60] sm:$0xff] %v1929
    %1946 = vst [vmem:[#allocation2 + $0x68] sm:$0xff] %v1930
    %1947 = vst [vmem:[#allocation2 + $0x70] sm:$0xff] %v1931
    %1948 = vst [vmem:[#allocation2 + $0x78] sm:$0xff] %v1932
    // Predicated region
    $region22: #{bert_embeddings_forward.1} parent=1 // pred_check
      _
    $region23: #{bert_embeddings_forward.1} parent=1 // pred_check_branch
      %1950 = sbr.rel (0) target = $region25
    $region24: #{bert_embeddings_forward.1} parent=1 // pred_region
      %s1952 = ssub.s32 2048, 2048
      %1953 = vsyncadd [#allocation3], %s1952
      %s1954 = sshll.u32 [#allocation2], 4
      %s1955 = int_to_ptr.vmem [resolvable:$true] %s1954
      %1960 = dma.vmem_to_hbm [thread:$0]  %s1955, 2048, %s5, [#allocation3], 128, 128, 8
    $region25: #{bert_embeddings_forward.1} parent=1 // pred_fallthru
      _
    // Predicated region
    $region26: #{bert_embeddings_forward.1} parent=1 // pred_check
      _
    $region27: #{bert_embeddings_forward.1} parent=1 // pred_check_branch
      %1962 = sbr.rel (0) target = $region29
    $region28: #{bert_embeddings_forward.1} parent=1 // pred_region
      %1963 = dma.done [#allocation3], 2048
    $region29: #{bert_embeddings_forward.1} parent=1 // pred_fallthru
      _
    %1964 = vsyncpa [#allocation3], 1

</llo_original>
